<compile_context>
chip_gen: v7x
topology: tpu7x:2x2x1
jax: 0.10.0
libtpu: 0.0.40
codegen_flags: <defaults>
</compile_context>

<pallas_src>
import functools

import jax
import jax.numpy as jnp
from jax.experimental import pallas as pl
from jax.experimental.pallas import tpu as pltpu

DROP_P = 0.3
TAU = 1.0


def _model_kernel(seed_ref, x_ref, t1_ref, t3_ref, t7_ref, t9_ref):
    tb, f = x_ref.shape
    pid = pl.program_id(0)

    # ---- stateless counter-based PRNG (portable: plain uint32 VPU ops) -------
    row = jax.lax.broadcasted_iota(jnp.uint32, (tb, f), 0)
    col = jax.lax.broadcasted_iota(jnp.uint32, (tb, f), 1)
    global_row = pid.astype(jnp.uint32) * jnp.uint32(tb) + row
    idx = global_row * jnp.uint32(f) + col                 # unique per element
    seed = seed_ref[0].astype(jnp.uint32)

    def rand_uniform(stream):
        # independent stream per random draw; mixes seed + global element index
        stream_c = jnp.uint32((stream * 0x9E3779B9) & 0xFFFFFFFF)
        h = (idx ^ stream_c) + seed * jnp.uint32(0x85EBCA77)
        h = h ^ (h >> 16)
        h = h * jnp.uint32(0x7FEB352D)
        h = h ^ (h >> 15)
        h = h * jnp.uint32(0x846CA68B)
        h = h ^ (h >> 16)
        # top 24 bits -> uniform float32 in [0, 1)
        u24 = (h >> 8).astype(jnp.int32).astype(jnp.float32)
        return u24 * jnp.float32(1.0 / (1 << 24))

    # ---- dropout (training mode, p = 0.3) ------------------------------------
    inv_keep = jnp.float32(1.0 / (1.0 - DROP_P))

    def dropout(v, stream):
        u = rand_uniform(stream)
        return jnp.where(u >= jnp.float32(DROP_P), v * inv_keep, jnp.float32(0.0))

    # ---- gumbel softmax over dim=-1 ------------------------------------------
    ones_col = jnp.ones((f, 1), dtype=jnp.float32)          # hoisted constant

    def gumbel_softmax(logits, stream, stable):
        u = rand_uniform(stream)
        eps = jnp.float32(1e-10)
        g = -jnp.log(-jnp.log(u + eps) + eps)                # Gumbel(0,1) noise
        z = (logits + g) * jnp.float32(1.0 / TAU)
        if stable:                                           # only needed when logits unbounded
            z = z - jnp.max(z, axis=-1, keepdims=True)
        e = jnp.exp(z)
        # sum over the lane axis on the MXU (idle otherwise) instead of the XLU
        denom = jnp.dot(e, ones_col,
                        preferred_element_type=jnp.float32,
                        precision=jax.lax.Precision.HIGHEST)  # (tb, 1)
        return e * (jnp.float32(1.0) / denom)

    x = x_ref[...]
    t1 = dropout(x, 0)
    t3 = dropout(x, 1)
    t4 = gumbel_softmax(t1, 2, stable=True)
    t6 = gumbel_softmax(t3, 3, stable=True)
    t7 = gumbel_softmax(t4, 4, stable=False)   # bounded logits -> skip max-sub
    t9 = gumbel_softmax(t6, 5, stable=False)

    t1_ref[...] = t1
    t3_ref[...] = t3
    t7_ref[...] = t7
    t9_ref[...] = t9


def model_forward(x, seed=0, tb=None):
    """Returns (t1, t3, t7, t7, t9) matching the PyTorch forward (training mode)."""
    B, F = x.shape
    if tb is None:
        tb = B
        for cand in (512, 256, 128, 64, 32, 16, 8):
            if B % cand == 0:
                tb = cand
                break
    assert B % tb == 0 and (tb % 8 == 0 or tb == B), "tile must divide batch; rows % 8 == 0"
    grid = (B // tb,)

    seed_arr = jnp.asarray([seed], dtype=jnp.int32)
    block = lambda: pl.BlockSpec((tb, F), lambda i, seed_ref: (i, 0))
    out_sds = tuple(jax.ShapeDtypeStruct((B, F), x.dtype) for _ in range(4))

    t1, t3, t7, t9 = pl.pallas_call(
        _model_kernel,
        out_shape=out_sds,
        grid_spec=pltpu.PrefetchScalarGridSpec(
            num_scalar_prefetch=1,          # seed -> SMEM, passed to index_maps
            grid=grid,
            in_specs=[block()],
            out_specs=tuple(block() for _ in range(4)),
        ),
        compiler_params=pltpu.CompilerParams(
            dimension_semantics=("parallel",),   # batch tiles independent (v7x 2 TCs)
        ),
    )(seed_arr, x)
    # PyTorch module returns the same t7 tensor twice.
    return (t1, t3, t7, t7, t9)


if __name__ == "__main__":
    key = jax.random.PRNGKey(0)
    B, F = 16, 128                      # small, TPU-friendly (batch, features)
    x = jnp.full((B, F), 0.25, dtype=jnp.float32) + 0.01 * jax.random.normal(
        key, (B, F), dtype=jnp.float32
    )

    outs = model_forward(x, seed=0, tb=8)   # tb=8 -> 2-step batch grid
    outs = jax.block_until_ready(outs)

    t1, t3, t7a, t7b, t9 = outs
    assert all(o.shape == x.shape for o in outs)

    # softmax outputs sum to 1 along dim=-1
    assert jnp.allclose(jnp.sum(t7a, axis=-1), 1.0, atol=2e-3)
    assert jnp.allclose(jnp.sum(t9, axis=-1), 1.0, atol=2e-3)

    # dropout sanity: kept values scaled by 1/(1-p), drop fraction ~ p
    drop_frac = float(jnp.mean((t1 == 0.0).astype(jnp.float32)))
    assert abs(drop_frac - DROP_P) < 0.1, drop_frac
    kept = t1 != 0.0
    assert jnp.allclose(jnp.where(kept, t1, x / (1.0 - DROP_P)),
                        x / (1.0 - DROP_P), atol=1e-5)

    # per-tile RNG decorrelation: tiles 0 and 1 must not share dropout masks
    assert not bool(jnp.array_equal(t1[:8] == 0.0, t1[8:] == 0.0))

    print("KERNEL_OK")
</pallas_src>

<mosaic_0001>
module attributes {stable_mosaic.version = 11 : i64} {
  func.func @_model_kernel(%arg0: i32, %arg1: memref<1xi32, #tpu.memory_space<smem>>, %arg2: memref<8x128xf32, #tpu.memory_space<vmem>>, %arg3: memref<8x128xf32, #tpu.memory_space<vmem>>, %arg4: memref<8x128xf32, #tpu.memory_space<vmem>>, %arg5: memref<8x128xf32, #tpu.memory_space<vmem>>, %arg6: memref<8x128xf32, #tpu.memory_space<vmem>>) attributes {dimension_semantics = [#tpu.dimension_semantics<parallel>], iteration_bounds = array<i64: 2>, scalar_prefetch = 1 : i64, scratch_operands = 0 : i64, tpu.core_type = #tpu.core_type<tc>, window_params = [{transform_indices = @transform_0, window_bounds = array<i64: 8, 128>}, {transform_indices = @transform_1, window_bounds = array<i64: 8, 128>}, {transform_indices = @transform_2, window_bounds = array<i64: 8, 128>}, {transform_indices = @transform_3, window_bounds = array<i64: 8, 128>}, {transform_indices = @transform_4, window_bounds = array<i64: 8, 128>}]} {
    %0 = tpu.iota {dimensions = array<i32: 0>} : vector<8x128xi32>
    %1 = tpu.iota {dimensions = array<i32: 1>} : vector<8x128xi32>
    %c8_i32 = arith.constant 8 : i32
    %2 = arith.muli %arg0, %c8_i32 : i32
    %3 = vector.broadcast %2 : i32 to vector<8x128xi32>
    %4 = arith.addi %3, %0 : vector<8x128xi32>
    %c128_i32 = arith.constant 128 : i32
    %5 = vector.broadcast %c128_i32 : i32 to vector<8x128xi32>
    %6 = arith.muli %4, %5 : vector<8x128xi32>
    %7 = arith.addi %6, %1 : vector<8x128xi32>
    %c0 = arith.constant 0 : index
    %8 = memref.load %arg1[%c0] : memref<1xi32, #tpu.memory_space<smem>>
    %cst = arith.constant 1.000000e+00 : f32
    %9 = vector.broadcast %cst : f32 to vector<128x1xf32>
    %c0_0 = arith.constant 0 : index
    %c0_1 = arith.constant 0 : index
    %10 = vector.load %arg2[%c0_0, %c0_1] : memref<8x128xf32, #tpu.memory_space<vmem>>, vector<8x128xf32>
    %c0_i32 = arith.constant 0 : i32
    %11 = vector.broadcast %c0_i32 : i32 to vector<8x128xi32>
    %12 = arith.xori %7, %11 : vector<8x128xi32>
    %c-2048144777_i32 = arith.constant -2048144777 : i32
    %13 = arith.muli %8, %c-2048144777_i32 : i32
    %14 = vector.broadcast %13 : i32 to vector<8x128xi32>
    %15 = arith.addi %12, %14 : vector<8x128xi32>
    %c16_i32 = arith.constant 16 : i32
    %16 = vector.broadcast %c16_i32 : i32 to vector<8x128xi32>
    %17 = arith.shrui %15, %16 : vector<8x128xi32>
    %18 = arith.xori %15, %17 : vector<8x128xi32>
    %c2146121005_i32 = arith.constant 2146121005 : i32
    %19 = vector.broadcast %c2146121005_i32 : i32 to vector<8x128xi32>
    %20 = arith.muli %18, %19 : vector<8x128xi32>
    %c15_i32 = arith.constant 15 : i32
    %21 = vector.broadcast %c15_i32 : i32 to vector<8x128xi32>
    %22 = arith.shrui %20, %21 : vector<8x128xi32>
    %23 = arith.xori %20, %22 : vector<8x128xi32>
    %c-2073254261_i32 = arith.constant -2073254261 : i32
    %24 = vector.broadcast %c-2073254261_i32 : i32 to vector<8x128xi32>
    %25 = arith.muli %23, %24 : vector<8x128xi32>
    %c16_i32_2 = arith.constant 16 : i32
    %26 = vector.broadcast %c16_i32_2 : i32 to vector<8x128xi32>
    %27 = arith.shrui %25, %26 : vector<8x128xi32>
    %28 = arith.xori %25, %27 : vector<8x128xi32>
    %c8_i32_3 = arith.constant 8 : i32
    %29 = vector.broadcast %c8_i32_3 : i32 to vector<8x128xi32>
    %30 = arith.shrui %28, %29 : vector<8x128xi32>
    %31 = arith.sitofp %30 : vector<8x128xi32> to vector<8x128xf32>
    %cst_4 = arith.constant 5.96046448E-8 : f32
    %32 = vector.broadcast %cst_4 : f32 to vector<8x128xf32>
    %33 = arith.mulf %31, %32 : vector<8x128xf32>
    %cst_5 = arith.constant 3.000000e-01 : f32
    %34 = vector.broadcast %cst_5 : f32 to vector<8x128xf32>
    %35 = arith.cmpf oge, %33, %34 : vector<8x128xf32>
    %cst_6 = arith.constant 1.42857146 : f32
    %36 = vector.broadcast %cst_6 : f32 to vector<8x128xf32>
    %37 = arith.mulf %10, %36 : vector<8x128xf32>
    %cst_7 = arith.constant 0.000000e+00 : f32
    %38 = vector.broadcast %cst_7 : f32 to vector<8x128xf32>
    %39 = arith.select %35, %37, %38 : vector<8x128xi1>, vector<8x128xf32>
    %c-1640531527_i32 = arith.constant -1640531527 : i32
    %40 = vector.broadcast %c-1640531527_i32 : i32 to vector<8x128xi32>
    %41 = arith.xori %7, %40 : vector<8x128xi32>
    %c-2048144777_i32_8 = arith.constant -2048144777 : i32
    %42 = arith.muli %8, %c-2048144777_i32_8 : i32
    %43 = vector.broadcast %42 : i32 to vector<8x128xi32>
    %44 = arith.addi %41, %43 : vector<8x128xi32>
    %c16_i32_9 = arith.constant 16 : i32
    %45 = vector.broadcast %c16_i32_9 : i32 to vector<8x128xi32>
    %46 = arith.shrui %44, %45 : vector<8x128xi32>
    %47 = arith.xori %44, %46 : vector<8x128xi32>
    %c2146121005_i32_10 = arith.constant 2146121005 : i32
    %48 = vector.broadcast %c2146121005_i32_10 : i32 to vector<8x128xi32>
    %49 = arith.muli %47, %48 : vector<8x128xi32>
    %c15_i32_11 = arith.constant 15 : i32
    %50 = vector.broadcast %c15_i32_11 : i32 to vector<8x128xi32>
    %51 = arith.shrui %49, %50 : vector<8x128xi32>
    %52 = arith.xori %49, %51 : vector<8x128xi32>
    %c-2073254261_i32_12 = arith.constant -2073254261 : i32
    %53 = vector.broadcast %c-2073254261_i32_12 : i32 to vector<8x128xi32>
    %54 = arith.muli %52, %53 : vector<8x128xi32>
    %c16_i32_13 = arith.constant 16 : i32
    %55 = vector.broadcast %c16_i32_13 : i32 to vector<8x128xi32>
    %56 = arith.shrui %54, %55 : vector<8x128xi32>
    %57 = arith.xori %54, %56 : vector<8x128xi32>
    %c8_i32_14 = arith.constant 8 : i32
    %58 = vector.broadcast %c8_i32_14 : i32 to vector<8x128xi32>
    %59 = arith.shrui %57, %58 : vector<8x128xi32>
    %60 = arith.sitofp %59 : vector<8x128xi32> to vector<8x128xf32>
    %cst_15 = arith.constant 5.96046448E-8 : f32
    %61 = vector.broadcast %cst_15 : f32 to vector<8x128xf32>
    %62 = arith.mulf %60, %61 : vector<8x128xf32>
    %cst_16 = arith.constant 3.000000e-01 : f32
    %63 = vector.broadcast %cst_16 : f32 to vector<8x128xf32>
    %64 = arith.cmpf oge, %62, %63 : vector<8x128xf32>
    %cst_17 = arith.constant 1.42857146 : f32
    %65 = vector.broadcast %cst_17 : f32 to vector<8x128xf32>
    %66 = arith.mulf %10, %65 : vector<8x128xf32>
    %cst_18 = arith.constant 0.000000e+00 : f32
    %67 = vector.broadcast %cst_18 : f32 to vector<8x128xf32>
    %68 = arith.select %64, %66, %67 : vector<8x128xi1>, vector<8x128xf32>
    %c1013904242_i32 = arith.constant 1013904242 : i32
    %69 = vector.broadcast %c1013904242_i32 : i32 to vector<8x128xi32>
    %70 = arith.xori %7, %69 : vector<8x128xi32>
    %c-2048144777_i32_19 = arith.constant -2048144777 : i32
    %71 = arith.muli %8, %c-2048144777_i32_19 : i32
    %72 = vector.broadcast %71 : i32 to vector<8x128xi32>
    %73 = arith.addi %70, %72 : vector<8x128xi32>
    %c16_i32_20 = arith.constant 16 : i32
    %74 = vector.broadcast %c16_i32_20 : i32 to vector<8x128xi32>
    %75 = arith.shrui %73, %74 : vector<8x128xi32>
    %76 = arith.xori %73, %75 : vector<8x128xi32>
    %c2146121005_i32_21 = arith.constant 2146121005 : i32
    %77 = vector.broadcast %c2146121005_i32_21 : i32 to vector<8x128xi32>
    %78 = arith.muli %76, %77 : vector<8x128xi32>
    %c15_i32_22 = arith.constant 15 : i32
    %79 = vector.broadcast %c15_i32_22 : i32 to vector<8x128xi32>
    %80 = arith.shrui %78, %79 : vector<8x128xi32>
    %81 = arith.xori %78, %80 : vector<8x128xi32>
    %c-2073254261_i32_23 = arith.constant -2073254261 : i32
    %82 = vector.broadcast %c-2073254261_i32_23 : i32 to vector<8x128xi32>
    %83 = arith.muli %81, %82 : vector<8x128xi32>
    %c16_i32_24 = arith.constant 16 : i32
    %84 = vector.broadcast %c16_i32_24 : i32 to vector<8x128xi32>
    %85 = arith.shrui %83, %84 : vector<8x128xi32>
    %86 = arith.xori %83, %85 : vector<8x128xi32>
    %c8_i32_25 = arith.constant 8 : i32
    %87 = vector.broadcast %c8_i32_25 : i32 to vector<8x128xi32>
    %88 = arith.shrui %86, %87 : vector<8x128xi32>
    %89 = arith.sitofp %88 : vector<8x128xi32> to vector<8x128xf32>
    %cst_26 = arith.constant 5.96046448E-8 : f32
    %90 = vector.broadcast %cst_26 : f32 to vector<8x128xf32>
    %91 = arith.mulf %89, %90 : vector<8x128xf32>
    %cst_27 = arith.constant 1.000000e-10 : f32
    %92 = vector.broadcast %cst_27 : f32 to vector<8x128xf32>
    %93 = arith.addf %91, %92 : vector<8x128xf32>
    %94 = math.log %93 : vector<8x128xf32>
    %cst_28 = arith.constant 0.000000e+00 : f32
    %95 = vector.broadcast %cst_28 : f32 to vector<8x128xf32>
    %96 = arith.subf %95, %94 : vector<8x128xf32>
    %cst_29 = arith.constant 1.000000e-10 : f32
    %97 = vector.broadcast %cst_29 : f32 to vector<8x128xf32>
    %98 = arith.addf %96, %97 : vector<8x128xf32>
    %99 = math.log %98 : vector<8x128xf32>
    %cst_30 = arith.constant 0.000000e+00 : f32
    %100 = vector.broadcast %cst_30 : f32 to vector<8x128xf32>
    %101 = arith.subf %100, %99 : vector<8x128xf32>
    %102 = arith.addf %39, %101 : vector<8x128xf32>
    %cst_31 = arith.constant 1.000000e+00 : f32
    %103 = vector.broadcast %cst_31 : f32 to vector<8x128xf32>
    %104 = arith.mulf %102, %103 : vector<8x128xf32>
    %cst_32 = arith.constant dense<0xFF800000> : vector<8xf32>
    %105 = vector.multi_reduction <maximumf>, %104, %cst_32 [1] : vector<8x128xf32> to vector<8xf32>
    %106 = vector.shape_cast %105 : vector<8xf32> to vector<8x1xf32>
    %107 = vector.broadcast %106 : vector<8x1xf32> to vector<8x128xf32>
    %108 = arith.subf %104, %107 : vector<8x128xf32>
    %109 = math.exp %108 : vector<8x128xf32>
    %cst_33 = arith.constant dense<0.000000e+00> : vector<8x1xf32>
    %110 = tpu.matmul %109, %9, %cst_33 {dimension_numbers = #tpu.dot_dimension_numbers<[1], [0], [0], [1], [0, 0, 1, 1], [], []>, precision = #tpu.contract_precision<fp32>} : vector<8x128xf32>, vector<128x1xf32>, vector<8x1xf32> -> vector<8x1xf32>
    %cst_34 = arith.constant 1.000000e+00 : f32
    %111 = vector.broadcast %cst_34 : f32 to vector<8x1xf32>
    %112 = arith.divf %111, %110 : vector<8x1xf32>
    %113 = vector.broadcast %112 : vector<8x1xf32> to vector<8x128xf32>
    %114 = arith.mulf %109, %113 : vector<8x128xf32>
    %c-626627285_i32 = arith.constant -626627285 : i32
    %115 = vector.broadcast %c-626627285_i32 : i32 to vector<8x128xi32>
    %116 = arith.xori %7, %115 : vector<8x128xi32>
    %c-2048144777_i32_35 = arith.constant -2048144777 : i32
    %117 = arith.muli %8, %c-2048144777_i32_35 : i32
    %118 = vector.broadcast %117 : i32 to vector<8x128xi32>
    %119 = arith.addi %116, %118 : vector<8x128xi32>
    %c16_i32_36 = arith.constant 16 : i32
    %120 = vector.broadcast %c16_i32_36 : i32 to vector<8x128xi32>
    %121 = arith.shrui %119, %120 : vector<8x128xi32>
    %122 = arith.xori %119, %121 : vector<8x128xi32>
    %c2146121005_i32_37 = arith.constant 2146121005 : i32
    %123 = vector.broadcast %c2146121005_i32_37 : i32 to vector<8x128xi32>
    %124 = arith.muli %122, %123 : vector<8x128xi32>
    %c15_i32_38 = arith.constant 15 : i32
    %125 = vector.broadcast %c15_i32_38 : i32 to vector<8x128xi32>
    %126 = arith.shrui %124, %125 : vector<8x128xi32>
    %127 = arith.xori %124, %126 : vector<8x128xi32>
    %c-2073254261_i32_39 = arith.constant -2073254261 : i32
    %128 = vector.broadcast %c-2073254261_i32_39 : i32 to vector<8x128xi32>
    %129 = arith.muli %127, %128 : vector<8x128xi32>
    %c16_i32_40 = arith.constant 16 : i32
    %130 = vector.broadcast %c16_i32_40 : i32 to vector<8x128xi32>
    %131 = arith.shrui %129, %130 : vector<8x128xi32>
    %132 = arith.xori %129, %131 : vector<8x128xi32>
    %c8_i32_41 = arith.constant 8 : i32
    %133 = vector.broadcast %c8_i32_41 : i32 to vector<8x128xi32>
    %134 = arith.shrui %132, %133 : vector<8x128xi32>
    %135 = arith.sitofp %134 : vector<8x128xi32> to vector<8x128xf32>
    %cst_42 = arith.constant 5.96046448E-8 : f32
    %136 = vector.broadcast %cst_42 : f32 to vector<8x128xf32>
    %137 = arith.mulf %135, %136 : vector<8x128xf32>
    %cst_43 = arith.constant 1.000000e-10 : f32
    %138 = vector.broadcast %cst_43 : f32 to vector<8x128xf32>
    %139 = arith.addf %137, %138 : vector<8x128xf32>
    %140 = math.log %139 : vector<8x128xf32>
    %cst_44 = arith.constant 0.000000e+00 : f32
    %141 = vector.broadcast %cst_44 : f32 to vector<8x128xf32>
    %142 = arith.subf %141, %140 : vector<8x128xf32>
    %cst_45 = arith.constant 1.000000e-10 : f32
    %143 = vector.broadcast %cst_45 : f32 to vector<8x128xf32>
    %144 = arith.addf %142, %143 : vector<8x128xf32>
    %145 = math.log %144 : vector<8x128xf32>
    %cst_46 = arith.constant 0.000000e+00 : f32
    %146 = vector.broadcast %cst_46 : f32 to vector<8x128xf32>
    %147 = arith.subf %146, %145 : vector<8x128xf32>
    %148 = arith.addf %68, %147 : vector<8x128xf32>
    %cst_47 = arith.constant 1.000000e+00 : f32
    %149 = vector.broadcast %cst_47 : f32 to vector<8x128xf32>
    %150 = arith.mulf %148, %149 : vector<8x128xf32>
    %cst_48 = arith.constant dense<0xFF800000> : vector<8xf32>
    %151 = vector.multi_reduction <maximumf>, %150, %cst_48 [1] : vector<8x128xf32> to vector<8xf32>
    %152 = vector.shape_cast %151 : vector<8xf32> to vector<8x1xf32>
    %153 = vector.broadcast %152 : vector<8x1xf32> to vector<8x128xf32>
    %154 = arith.subf %150, %153 : vector<8x128xf32>
    %155 = math.exp %154 : vector<8x128xf32>
    %cst_49 = arith.constant dense<0.000000e+00> : vector<8x1xf32>
    %156 = tpu.matmul %155, %9, %cst_49 {dimension_numbers = #tpu.dot_dimension_numbers<[1], [0], [0], [1], [0, 0, 1, 1], [], []>, precision = #tpu.contract_precision<fp32>} : vector<8x128xf32>, vector<128x1xf32>, vector<8x1xf32> -> vector<8x1xf32>
    %cst_50 = arith.constant 1.000000e+00 : f32
    %157 = vector.broadcast %cst_50 : f32 to vector<8x1xf32>
    %158 = arith.divf %157, %156 : vector<8x1xf32>
    %159 = vector.broadcast %158 : vector<8x1xf32> to vector<8x128xf32>
    %160 = arith.mulf %155, %159 : vector<8x128xf32>
    %c2027808484_i32 = arith.constant 2027808484 : i32
    %161 = vector.broadcast %c2027808484_i32 : i32 to vector<8x128xi32>
    %162 = arith.xori %7, %161 : vector<8x128xi32>
    %c-2048144777_i32_51 = arith.constant -2048144777 : i32
    %163 = arith.muli %8, %c-2048144777_i32_51 : i32
    %164 = vector.broadcast %163 : i32 to vector<8x128xi32>
    %165 = arith.addi %162, %164 : vector<8x128xi32>
    %c16_i32_52 = arith.constant 16 : i32
    %166 = vector.broadcast %c16_i32_52 : i32 to vector<8x128xi32>
    %167 = arith.shrui %165, %166 : vector<8x128xi32>
    %168 = arith.xori %165, %167 : vector<8x128xi32>
    %c2146121005_i32_53 = arith.constant 2146121005 : i32
    %169 = vector.broadcast %c2146121005_i32_53 : i32 to vector<8x128xi32>
    %170 = arith.muli %168, %169 : vector<8x128xi32>
    %c15_i32_54 = arith.constant 15 : i32
    %171 = vector.broadcast %c15_i32_54 : i32 to vector<8x128xi32>
    %172 = arith.shrui %170, %171 : vector<8x128xi32>
    %173 = arith.xori %170, %172 : vector<8x128xi32>
    %c-2073254261_i32_55 = arith.constant -2073254261 : i32
    %174 = vector.broadcast %c-2073254261_i32_55 : i32 to vector<8x128xi32>
    %175 = arith.muli %173, %174 : vector<8x128xi32>
    %c16_i32_56 = arith.constant 16 : i32
    %176 = vector.broadcast %c16_i32_56 : i32 to vector<8x128xi32>
    %177 = arith.shrui %175, %176 : vector<8x128xi32>
    %178 = arith.xori %175, %177 : vector<8x128xi32>
    %c8_i32_57 = arith.constant 8 : i32
    %179 = vector.broadcast %c8_i32_57 : i32 to vector<8x128xi32>
    %180 = arith.shrui %178, %179 : vector<8x128xi32>
    %181 = arith.sitofp %180 : vector<8x128xi32> to vector<8x128xf32>
    %cst_58 = arith.constant 5.96046448E-8 : f32
    %182 = vector.broadcast %cst_58 : f32 to vector<8x128xf32>
    %183 = arith.mulf %181, %182 : vector<8x128xf32>
    %cst_59 = arith.constant 1.000000e-10 : f32
    %184 = vector.broadcast %cst_59 : f32 to vector<8x128xf32>
    %185 = arith.addf %183, %184 : vector<8x128xf32>
    %186 = math.log %185 : vector<8x128xf32>
    %cst_60 = arith.constant 0.000000e+00 : f32
    %187 = vector.broadcast %cst_60 : f32 to vector<8x128xf32>
    %188 = arith.subf %187, %186 : vector<8x128xf32>
    %cst_61 = arith.constant 1.000000e-10 : f32
    %189 = vector.broadcast %cst_61 : f32 to vector<8x128xf32>
    %190 = arith.addf %188, %189 : vector<8x128xf32>
    %191 = math.log %190 : vector<8x128xf32>
    %cst_62 = arith.constant 0.000000e+00 : f32
    %192 = vector.broadcast %cst_62 : f32 to vector<8x128xf32>
    %193 = arith.subf %192, %191 : vector<8x128xf32>
    %194 = arith.addf %114, %193 : vector<8x128xf32>
    %cst_63 = arith.constant 1.000000e+00 : f32
    %195 = vector.broadcast %cst_63 : f32 to vector<8x128xf32>
    %196 = arith.mulf %194, %195 : vector<8x128xf32>
    %197 = math.exp %196 : vector<8x128xf32>
    %cst_64 = arith.constant dense<0.000000e+00> : vector<8x1xf32>
    %198 = tpu.matmul %197, %9, %cst_64 {dimension_numbers = #tpu.dot_dimension_numbers<[1], [0], [0], [1], [0, 0, 1, 1], [], []>, precision = #tpu.contract_precision<fp32>} : vector<8x128xf32>, vector<128x1xf32>, vector<8x1xf32> -> vector<8x1xf32>
    %cst_65 = arith.constant 1.000000e+00 : f32
    %199 = vector.broadcast %cst_65 : f32 to vector<8x1xf32>
    %200 = arith.divf %199, %198 : vector<8x1xf32>
    %201 = vector.broadcast %200 : vector<8x1xf32> to vector<8x128xf32>
    %202 = arith.mulf %197, %201 : vector<8x128xf32>
    %c387276957_i32 = arith.constant 387276957 : i32
    %203 = vector.broadcast %c387276957_i32 : i32 to vector<8x128xi32>
    %204 = arith.xori %7, %203 : vector<8x128xi32>
    %c-2048144777_i32_66 = arith.constant -2048144777 : i32
    %205 = arith.muli %8, %c-2048144777_i32_66 : i32
    %206 = vector.broadcast %205 : i32 to vector<8x128xi32>
    %207 = arith.addi %204, %206 : vector<8x128xi32>
    %c16_i32_67 = arith.constant 16 : i32
    %208 = vector.broadcast %c16_i32_67 : i32 to vector<8x128xi32>
    %209 = arith.shrui %207, %208 : vector<8x128xi32>
    %210 = arith.xori %207, %209 : vector<8x128xi32>
    %c2146121005_i32_68 = arith.constant 2146121005 : i32
    %211 = vector.broadcast %c2146121005_i32_68 : i32 to vector<8x128xi32>
    %212 = arith.muli %210, %211 : vector<8x128xi32>
    %c15_i32_69 = arith.constant 15 : i32
    %213 = vector.broadcast %c15_i32_69 : i32 to vector<8x128xi32>
    %214 = arith.shrui %212, %213 : vector<8x128xi32>
    %215 = arith.xori %212, %214 : vector<8x128xi32>
    %c-2073254261_i32_70 = arith.constant -2073254261 : i32
    %216 = vector.broadcast %c-2073254261_i32_70 : i32 to vector<8x128xi32>
    %217 = arith.muli %215, %216 : vector<8x128xi32>
    %c16_i32_71 = arith.constant 16 : i32
    %218 = vector.broadcast %c16_i32_71 : i32 to vector<8x128xi32>
    %219 = arith.shrui %217, %218 : vector<8x128xi32>
    %220 = arith.xori %217, %219 : vector<8x128xi32>
    %c8_i32_72 = arith.constant 8 : i32
    %221 = vector.broadcast %c8_i32_72 : i32 to vector<8x128xi32>
    %222 = arith.shrui %220, %221 : vector<8x128xi32>
    %223 = arith.sitofp %222 : vector<8x128xi32> to vector<8x128xf32>
    %cst_73 = arith.constant 5.96046448E-8 : f32
    %224 = vector.broadcast %cst_73 : f32 to vector<8x128xf32>
    %225 = arith.mulf %223, %224 : vector<8x128xf32>
    %cst_74 = arith.constant 1.000000e-10 : f32
    %226 = vector.broadcast %cst_74 : f32 to vector<8x128xf32>
    %227 = arith.addf %225, %226 : vector<8x128xf32>
    %228 = math.log %227 : vector<8x128xf32>
    %cst_75 = arith.constant 0.000000e+00 : f32
    %229 = vector.broadcast %cst_75 : f32 to vector<8x128xf32>
    %230 = arith.subf %229, %228 : vector<8x128xf32>
    %cst_76 = arith.constant 1.000000e-10 : f32
    %231 = vector.broadcast %cst_76 : f32 to vector<8x128xf32>
    %232 = arith.addf %230, %231 : vector<8x128xf32>
    %233 = math.log %232 : vector<8x128xf32>
    %cst_77 = arith.constant 0.000000e+00 : f32
    %234 = vector.broadcast %cst_77 : f32 to vector<8x128xf32>
    %235 = arith.subf %234, %233 : vector<8x128xf32>
    %236 = arith.addf %160, %235 : vector<8x128xf32>
    %cst_78 = arith.constant 1.000000e+00 : f32
    %237 = vector.broadcast %cst_78 : f32 to vector<8x128xf32>
    %238 = arith.mulf %236, %237 : vector<8x128xf32>
    %239 = math.exp %238 : vector<8x128xf32>
    %cst_79 = arith.constant dense<0.000000e+00> : vector<8x1xf32>
    %240 = tpu.matmul %239, %9, %cst_79 {dimension_numbers = #tpu.dot_dimension_numbers<[1], [0], [0], [1], [0, 0, 1, 1], [], []>, precision = #tpu.contract_precision<fp32>} : vector<8x128xf32>, vector<128x1xf32>, vector<8x1xf32> -> vector<8x1xf32>
    %cst_80 = arith.constant 1.000000e+00 : f32
    %241 = vector.broadcast %cst_80 : f32 to vector<8x1xf32>
    %242 = arith.divf %241, %240 : vector<8x1xf32>
    %243 = vector.broadcast %242 : vector<8x1xf32> to vector<8x128xf32>
    %244 = arith.mulf %239, %243 : vector<8x128xf32>
    %c0_81 = arith.constant 0 : index
    %c0_82 = arith.constant 0 : index
    %245 = vector.load %arg3[%c0_81, %c0_82] : memref<8x128xf32, #tpu.memory_space<vmem>>, vector<8x128xf32>
    tpu.vector_store %arg3[%c0_81, %c0_82], %39 {strides = array<i32>} : memref<8x128xf32, #tpu.memory_space<vmem>>, vector<8x128xf32>,
    %c0_83 = arith.constant 0 : index
    %c0_84 = arith.constant 0 : index
    %246 = vector.load %arg4[%c0_83, %c0_84] : memref<8x128xf32, #tpu.memory_space<vmem>>, vector<8x128xf32>
    tpu.vector_store %arg4[%c0_83, %c0_84], %68 {strides = array<i32>} : memref<8x128xf32, #tpu.memory_space<vmem>>, vector<8x128xf32>,
    %c0_85 = arith.constant 0 : index
    %c0_86 = arith.constant 0 : index
    %247 = vector.load %arg5[%c0_85, %c0_86] : memref<8x128xf32, #tpu.memory_space<vmem>>, vector<8x128xf32>
    tpu.vector_store %arg5[%c0_85, %c0_86], %202 {strides = array<i32>} : memref<8x128xf32, #tpu.memory_space<vmem>>, vector<8x128xf32>,
    %c0_87 = arith.constant 0 : index
    %c0_88 = arith.constant 0 : index
    %248 = vector.load %arg6[%c0_87, %c0_88] : memref<8x128xf32, #tpu.memory_space<vmem>>, vector<8x128xf32>
    tpu.vector_store %arg6[%c0_87, %c0_88], %244 {strides = array<i32>} : memref<8x128xf32, #tpu.memory_space<vmem>>, vector<8x128xf32>,
    return
  }
  func.func @transform_0(%arg0: i32, %arg1: memref<1xi32, #tpu.memory_space<smem>>) -> (i32, i32) {
    %c0_i32 = arith.constant 0 : i32
    %c0_i32_0 = arith.constant 0 : i32
    return %arg0, %c0_i32 : i32, i32
  }
  func.func @transform_1(%arg0: i32, %arg1: memref<1xi32, #tpu.memory_space<smem>>) -> (i32, i32) {
    %c0_i32 = arith.constant 0 : i32
    %c0_i32_0 = arith.constant 0 : i32
    return %arg0, %c0_i32 : i32, i32
  }
  func.func @transform_2(%arg0: i32, %arg1: memref<1xi32, #tpu.memory_space<smem>>) -> (i32, i32) {
    %c0_i32 = arith.constant 0 : i32
    %c0_i32_0 = arith.constant 0 : i32
    return %arg0, %c0_i32 : i32, i32
  }
  func.func @transform_3(%arg0: i32, %arg1: memref<1xi32, #tpu.memory_space<smem>>) -> (i32, i32) {
    %c0_i32 = arith.constant 0 : i32
    %c0_i32_0 = arith.constant 0 : i32
    return %arg0, %c0_i32 : i32, i32
  }
  func.func @transform_4(%arg0: i32, %arg1: memref<1xi32, #tpu.memory_space<smem>>) -> (i32, i32) {
    %c0_i32 = arith.constant 0 : i32
    %c0_i32_0 = arith.constant 0 : i32
    return %arg0, %c0_i32 : i32, i32
  }
}

</mosaic_0001>

<llo_original>
// kernel: tpu_custom_call.1
$region0: #{tpu_custom_call.1}
  #allocation0 [shape = 'u32[]', space=smem, size = 0x4, offset = 0x4, fixed_abs, tag = 'smem constant byte address 0x4 - core index']
  #allocation1 [shape = 'u32[144,128]{1,0:T(1,128)}', space=vmem, size = 0x12000, scoped, tag = 'internal scratch']
  #allocation2 [shape = 's32[1]{0}', space=sflag, size = 0x4, scoped, tag = 'scoped memory for tpu_custom_call.1']
  #allocation3 [shape = 's32[1]{0:T(128)S(6)}', space=smem, size = 0x200, scoped, tag = 'prefetched SMEM operand 0']
  %s0 = inlined_call_operand.<no memory space> [shape: s32[1], index: 0, kind: input, shape index: {}]
  %s1 = inlined_call_operand.hbm [shape: f32[16,128], index: 1, kind: input, shape index: {}]
  %s2 = inlined_call_operand.hbm [shape: f32[16,128], index: 2, kind: output, shape index: {0}]
  %s3 = inlined_call_operand.hbm [shape: f32[16,128], index: 3, kind: output, shape index: {1}]
  %s4 = inlined_call_operand.hbm [shape: f32[16,128], index: 4, kind: output, shape index: {2}]
  %s5 = inlined_call_operand.hbm [shape: f32[16,128], index: 5, kind: output, shape index: {3}]
  %6 = xla_tuple %s2, %s3, %s4, %s5
  %s7 = sld [smem:[#allocation0]]
  $region65: #{tpu_custom_call.1} parent=0
    _
  %s9 = ssub.s32 1, %s7
  %s10 = scalar_select 0, %s9, %s7
  %11 = sst [smem:[#allocation3]] %s0
  $region1: #{tpu_custom_call.1} parent=0
    #allocation4 [shape = 'u8[8192]{0}', space=vmem, size = 0x2000, scoped, tag = 'input window, operand 1']
    #allocation5 [shape = 's32[2]{0}', space=sflag, size = 0x8, scoped, tag = 'scoped memory for tpu_custom_call.1']
    #allocation6 [shape = 's32[2]{0}', space=sflag, size = 0x8, scoped, tag = 'scoped memory for tpu_custom_call.1']
    #allocation7 [shape = 'u8[8192]{0}', space=vmem, size = 0x2000, scoped, tag = 'output window, operand 0']
    #allocation8 [shape = 'u8[8192]{0}', space=vmem, size = 0x2000, scoped, tag = 'output window, operand 1']
    #allocation9 [shape = 's32[2]{0}', space=sflag, size = 0x8, scoped, tag = 'scoped memory for tpu_custom_call.1']
    #allocation10 [shape = 'u8[8192]{0}', space=vmem, size = 0x2000, scoped, tag = 'output window, operand 2']
    #allocation11 [shape = 'u8[8192]{0}', space=vmem, size = 0x2000, scoped, tag = 'output window, operand 3']
    #allocation12 [shape = 's32[2]{0}', space=sflag, size = 0x8, scoped, tag = 'scoped memory for tpu_custom_call.1']
    %12 = vsyncpa [#allocation5], 0
    %s13 = scalar_lea.sflag [#allocation5], 1
    %14 = vsyncpa %s13, 0
    %15 = vsyncpa [#allocation6], 0
    %s16 = scalar_lea.sflag [#allocation6], 1
    %17 = vsyncpa %s16, 0
    %18 = vsyncpa [#allocation9], 0
    %s19 = scalar_lea.sflag [#allocation9], 1
    %20 = vsyncpa %s19, 0
    %21 = vsyncpa [#allocation12], 0
    %s22 = scalar_lea.sflag [#allocation12], 1
    %23 = vsyncpa %s22, 0
    loop: start=0, step=1, limit=4
    $region2: #{tpu_custom_call.1} parent=1 // loop_pre_header
      _
    $region3: #{tpu_custom_call.1} parent=1 // loop_header
      %s25 = sphi 0, %s29
      %p26 = scmp.ge.s32.totalorder %s25, 4
      %s35 = sphi 0, %s37
      %s38 = sphi 0, %s35
      %s39 = sphi 0, %s38
      %s55 = sphi 0, %s39
      %s61 = sphi 0, %s63
      %s64 = sphi 0, %s61
      %s65 = sphi 0, %s64
      %s81 = sphi 0, %s65
      %s87 = sphi 0, %s89
      %s90 = sphi 0, %s87
      %s91 = sphi 0, %s90
      %s107 = sphi 0, %s91
      %s113 = sphi 0, %s115
      %s116 = sphi 0, %s113
      %s117 = sphi 0, %s116
      %s133 = sphi 0, %s117
      %s139 = sphi 0, %s141
      %s142 = sphi 0, %s139
      %s143 = sphi 0, %s142
      %s159 = sphi 0, %s143
    $region4: #{tpu_custom_call.1} parent=1 // loop_header_branch
      %28 = sbr.rel (%p26) target = $region8
    $region5: #{tpu_custom_call.1} parent=1 // loop_body
      %s30 = ssub.s32 %s25, 1
      %s31 = ssub.s32 %s25, 2
      %s32 = sadd.s32 %s25, 1
      %s33 = ssub.s32 %s25, %s32
      %p34 = scmp.eq.s32.totalorder %s33, 0
      %s36 = sadd.s32 %s35, 1
      %s37 = scalar_select %p34, %s35, %s36
      %p40 = pneg %p34
      %p41 = scmp.eq.s32.totalorder %s25, 1
      %p42 = por %p40, %p41
      %p43 = scmp.ne.s32.totalorder %s35, %s38
      %p44 = scmp.eq.s32.totalorder %s25, 0
      %p45 = por %p43, %p44
      %p46 = scmp.ne.s32.totalorder %s35, %s38
      %p47 = scmp.eq.s32.totalorder %s30, 1
      %p48 = por %p46, %p47
      %p49 = scmp.ne.s32.totalorder %s38, %s39
      %p50 = scmp.eq.s32.totalorder %s30, 0
      %p51 = por %p49, %p50
      %p52 = scmp.ne.s32.totalorder %s38, %s39
      %p53 = scmp.eq.s32.totalorder %s31, 1
      %p54 = por %p52, %p53
      %p56 = scmp.ne.s32.totalorder %s39, %s55
      %p57 = scmp.eq.s32.totalorder %s31, 0
      %p58 = por %p56, %p57
      %s59 = ssub.s32 %s25, %s32
      %p60 = scmp.eq.s32.totalorder %s59, 0
      %s62 = sadd.s32 %s61, 1
      %s63 = scalar_select %p60, %s61, %s62
      %p66 = pneg %p60
      %p67 = scmp.eq.s32.totalorder %s25, 1
      %p68 = por %p66, %p67
      %p69 = scmp.ne.s32.totalorder %s61, %s64
      %p70 = scmp.eq.s32.totalorder %s25, 0
      %p71 = por %p69, %p70
      %p72 = scmp.ne.s32.totalorder %s61, %s64
      %p73 = scmp.eq.s32.totalorder %s30, 1
      %p74 = por %p72, %p73
      %p75 = scmp.ne.s32.totalorder %s64, %s65
      %p76 = scmp.eq.s32.totalorder %s30, 0
      %p77 = por %p75, %p76
      %p78 = scmp.ne.s32.totalorder %s64, %s65
      %p79 = scmp.eq.s32.totalorder %s31, 1
      %p80 = por %p78, %p79
      %p82 = scmp.ne.s32.totalorder %s65, %s81
      %p83 = scmp.eq.s32.totalorder %s31, 0
      %p84 = por %p82, %p83
      %s85 = ssub.s32 %s25, %s32
      %p86 = scmp.eq.s32.totalorder %s85, 0
      %s88 = sadd.s32 %s87, 1
      %s89 = scalar_select %p86, %s87, %s88
      %p92 = pneg %p86
      %p93 = scmp.eq.s32.totalorder %s25, 1
      %p94 = por %p92, %p93
      %p95 = scmp.ne.s32.totalorder %s87, %s90
      %p96 = scmp.eq.s32.totalorder %s25, 0
      %p97 = por %p95, %p96
      %p98 = scmp.ne.s32.totalorder %s87, %s90
      %p99 = scmp.eq.s32.totalorder %s30, 1
      %p100 = por %p98, %p99
      %p101 = scmp.ne.s32.totalorder %s90, %s91
      %p102 = scmp.eq.s32.totalorder %s30, 0
      %p103 = por %p101, %p102
      %p104 = scmp.ne.s32.totalorder %s90, %s91
      %p105 = scmp.eq.s32.totalorder %s31, 1
      %p106 = por %p104, %p105
      %p108 = scmp.ne.s32.totalorder %s91, %s107
      %p109 = scmp.eq.s32.totalorder %s31, 0
      %p110 = por %p108, %p109
      %s111 = ssub.s32 %s25, %s32
      %p112 = scmp.eq.s32.totalorder %s111, 0
      %s114 = sadd.s32 %s113, 1
      %s115 = scalar_select %p112, %s113, %s114
      %p118 = pneg %p112
      %p119 = scmp.eq.s32.totalorder %s25, 1
      %p120 = por %p118, %p119
      %p121 = scmp.ne.s32.totalorder %s113, %s116
      %p122 = scmp.eq.s32.totalorder %s25, 0
      %p123 = por %p121, %p122
      %p124 = scmp.ne.s32.totalorder %s113, %s116
      %p125 = scmp.eq.s32.totalorder %s30, 1
      %p126 = por %p124, %p125
      %p127 = scmp.ne.s32.totalorder %s116, %s117
      %p128 = scmp.eq.s32.totalorder %s30, 0
      %p129 = por %p127, %p128
      %p130 = scmp.ne.s32.totalorder %s116, %s117
      %p131 = scmp.eq.s32.totalorder %s31, 1
      %p132 = por %p130, %p131
      %p134 = scmp.ne.s32.totalorder %s117, %s133
      %p135 = scmp.eq.s32.totalorder %s31, 0
      %p136 = por %p134, %p135
      %s137 = ssub.s32 %s25, %s32
      %p138 = scmp.eq.s32.totalorder %s137, 0
      %s140 = sadd.s32 %s139, 1
      %s141 = scalar_select %p138, %s139, %s140
      %p144 = pneg %p138
      %p145 = scmp.eq.s32.totalorder %s25, 1
      %p146 = por %p144, %p145
      %p147 = scmp.ne.s32.totalorder %s139, %s142
      %p148 = scmp.eq.s32.totalorder %s25, 0
      %p149 = por %p147, %p148
      %p150 = scmp.ne.s32.totalorder %s139, %s142
      %p151 = scmp.eq.s32.totalorder %s30, 1
      %p152 = por %p150, %p151
      %p153 = scmp.ne.s32.totalorder %s142, %s143
      %p154 = scmp.eq.s32.totalorder %s30, 0
      %p155 = por %p153, %p154
      %p156 = scmp.ne.s32.totalorder %s142, %s143
      %p157 = scmp.eq.s32.totalorder %s31, 1
      %p158 = por %p156, %p157
      %p160 = scmp.ne.s32.totalorder %s143, %s159
      %p161 = scmp.eq.s32.totalorder %s31, 0
      %p162 = por %p160, %p161
      %p163 = scmp.le.s32.totalorder 1, %s25
      %p164 = scmp.lt.s32.totalorder %s25, 3
      %p165 = pnand %p163, %p164
      %p166 = pneg %p165
      // Predicated region
      $region9: #{tpu_custom_call.1} parent=5 // pred_check
        _
      $region10: #{tpu_custom_call.1} parent=5 // pred_check_branch
        %168 = sbr.rel (%p165) target = $region12
      $region11: #{tpu_custom_call.1} parent=5 // pred_region
        %s169 = ssub.s32 %s25, 1
      $region12: #{tpu_custom_call.1} parent=5 // pred_fallthru
        _
      %p170 = scmp.lt.s32.totalorder %s25, 2
      // Predicated region
      $region13: #{tpu_custom_call.1} parent=5 // pred_check
        %p171 = pneg %p170
      $region14: #{tpu_custom_call.1} parent=5 // pred_check_branch
        %173 = sbr.rel (%p171) target = $region16
      $region15: #{tpu_custom_call.1} parent=5 // pred_region
        // Predicated region
        $region17: #{tpu_custom_call.1} parent=15 // pred_check
          %p174 = pneg %p45
        $region18: #{tpu_custom_call.1} parent=15 // pred_check_branch
          %176 = sbr.rel (%p174) target = $region20
        $region19: #{tpu_custom_call.1} parent=15 // pred_region
          %s177 = sand.u32 %s35, 1
          %s178 = scalar_lea.sflag [#allocation5], %s177
          %s179 = sand.u32 %s35, 1
          %s180 = smul.addr %s179, 8
          %s181 = scalar_lea.vmem [#allocation4], %s180
          %s183 = ssub.s32 128, 128
          %184 = vsyncadd %s178, %s183
          %s185 = smul.addr %s25, 128
          %s186 = scalar_lea.hbm %s1, %s185
          %s188 = sshll.u32 %s181, 4
          %s189 = int_to_ptr.vmem [resolvable:$true] %s188
          %191 = dma.hbm_to_vmem [thread:$0]  %s186, 128, %s189, %s178
        $region20: #{tpu_custom_call.1} parent=15 // pred_fallthru
          _
      $region16: #{tpu_custom_call.1} parent=5 // pred_fallthru
        _
      %p192 = scmp.le.s32.totalorder 1, %s25
      %p193 = scmp.lt.s32.totalorder %s25, 3
      %p194 = pnand %p192, %p193
      %p195 = pneg %p194
      // Predicated region
      $region21: #{tpu_custom_call.1} parent=5 // pred_check
        _
      $region22: #{tpu_custom_call.1} parent=5 // pred_check_branch
        %197 = sbr.rel (%p194) target = $region24
      $region23: #{tpu_custom_call.1} parent=5 // pred_region
        %s198 = ssub.s32 %s25, 1
        %s199 = sand.u32 %s38, 1
        %s200 = scalar_lea.sflag [#allocation5], %s199
        %s201 = sand.u32 %s38, 1
        %s202 = smul.addr %s201, 8
        %s203 = scalar_lea.vmem [#allocation4], %s202
        // Predicated region
        $region25: #{tpu_custom_call.1} parent=23 // pred_check
          %p204 = pneg %p51
        $region26: #{tpu_custom_call.1} parent=23 // pred_check_branch
          %206 = sbr.rel (%p204) target = $region28
        $region27: #{tpu_custom_call.1} parent=23 // pred_region
          %207 = dma.done %s200, 128
        $region28: #{tpu_custom_call.1} parent=23 // pred_fallthru
          _
        %s208 = sand.u32 %s38, 1
        %s209 = scalar_lea.sflag [#allocation5], %s208
        %s210 = sand.u32 %s38, 1
        %s211 = smul.addr %s210, 8
        %s212 = scalar_lea.vmem [#allocation4], %s211
        %p213 = pneg %p51
        %p214 = pneg %p48
        %p215 = pneg %p77
        %p216 = pneg %p74
        %s217 = sand.u32 %s64, 1
        %s218 = scalar_lea.sflag [#allocation6], %s217
        %s219 = sand.u32 %s64, 1
        %s220 = smul.addr %s219, 8
        %s221 = scalar_lea.vmem [#allocation7], %s220
        %p222 = pneg %p103
        %p223 = pneg %p100
        %s224 = sand.u32 %s30, 1
        %s225 = scalar_lea.sflag [#allocation9], %s224
        %s226 = sand.u32 %s90, 1
        %s227 = smul.addr %s226, 8
        %s228 = scalar_lea.vmem [#allocation8], %s227
        %p229 = pneg %p129
        %p230 = pneg %p126
        %s231 = sand.u32 %s30, 1
        %s232 = scalar_lea.sflag [#allocation9], %s231
        %s233 = sand.u32 %s116, 1
        %s234 = smul.addr %s233, 8
        %s235 = scalar_lea.vmem [#allocation10], %s234
        %p236 = pneg %p155
        %p237 = pneg %p152
        %s238 = sand.u32 %s142, 1
        %s239 = scalar_lea.sflag [#allocation12], %s238
        %s240 = sand.u32 %s142, 1
        %s241 = smul.addr %s240, 8
        %s242 = scalar_lea.vmem [#allocation11], %s241
        %v243 = vlaneseq
        %v244 = vshrl.u32 %v243, 7
        %v245 = vlaneseq
        %v246 = vand.u32 %v245, 127
        %s247 = smul.u32 %s30, 8
        %v248 = vstv %s247
        %v249 = vadd.s32 %v248, %v244
        %v250 = vmul.u32 %v249, 128
        %v251 = vadd.s32 %v250, %v246
        %s252 = sld [smem:[#allocation3]]
        %v253 = vld [vmem:[%s203] sm:$0xff]
        %s254 = smul.u32 %s252, 2246822519
        %v255 = vstv %s254
        %v256 = vadd.s32 %v251, %v255
        %v257 = vshrl.u32 %v256, 16
        %v258 = vxor.u32 %v256, %v257
        %v259 = vmul.u32 %v258, 2146121005
        %v260 = vshrl.u32 %v259, 15
        %v261 = vxor.u32 %v259, %v260
        %v262 = vmul.u32 %v261, 2221713035
        %v263 = vshrl.u32 %v262, 16
        %v264 = vxor.u32 %v262, %v263
        %v265 = vshrl.u32 %v264, 8
        %v266 = vcvt.s32.f32 %v265
        %v267 = vmul.f32 %v266, 5.9604645e-08
        %vm268 = vcmp.ge.f32.partialorder %v267, 0.3
        %v269 = vmul.f32 %v253, 1.4285715
        %v270 = vsel %vm268, %v269, 0.0
        %v271 = vxor.u32 %v251, 2654435769
        %v272 = vadd.s32 %v271, %v255
        %v273 = vshrl.u32 %v272, 16
        %v274 = vxor.u32 %v272, %v273
        %v275 = vmul.u32 %v274, 2146121005
        %v276 = vshrl.u32 %v275, 15
        %v277 = vxor.u32 %v275, %v276
        %v278 = vmul.u32 %v277, 2221713035
        %v279 = vshrl.u32 %v278, 16
        %v280 = vxor.u32 %v278, %v279
        %v281 = vshrl.u32 %v280, 8
        %v282 = vcvt.s32.f32 %v281
        %v283 = vmul.f32 %v282, 5.9604645e-08
        %vm284 = vcmp.ge.f32.partialorder %v283, 0.3
        %v285 = vsel %vm284, %v269, 0.0
        %v286 = vxor.u32 %v251, 1013904242
        %v287 = vadd.s32 %v286, %v255
        %v288 = vshrl.u32 %v287, 16
        %v289 = vxor.u32 %v287, %v288
        %v290 = vmul.u32 %v289, 2146121005
        %v291 = vshrl.u32 %v290, 15
        %v292 = vxor.u32 %v290, %v291
        %v293 = vmul.u32 %v292, 2221713035
        %v294 = vshrl.u32 %v293, 16
        %v295 = vxor.u32 %v293, %v294
        %v296 = vshrl.u32 %v295, 8
        %v297 = vcvt.s32.f32 %v296
        %v298 = vmul.f32 %v297, 5.9604645e-08
        %v299 = vadd.f32 %v298, 1e-10
        %v300 = vlog2.pop %v299
        %v301 = vmul.f32 %v300, 0.6931472
        %v302 = vsub.f32 0.0, %v301
        %v303 = vadd.f32 %v302, 1e-10
        %v304 = vlog2.pop %v303
        %v305 = vmul.f32 %v304, 0.6931472
        %v306 = vsub.f32 0.0, %v305
        %v307 = vadd.f32 %v270, %v306
        %308 = vmax.xlane.f32.xlu0 %v307
        %v309 = vpop.xlane.xlu0 %308
        %v310 = vsub.f32 %v307, %v309
        %v311 = vmul.f32 %v310, 1.442695
        %v312 = vpow.pop %v311
        %313 = vmatprep.subr.mxu0 0.0
        %314 = vmatpush1.msra.mxu0 1.0
        %315 = vmatprep.subr.mxu0 0.0
        %316 = vmatpush1.msra.mxu0 1.0
        %317 = vmatprep.subr.mxu0 0.0
        %318 = vmatpush1.msra.mxu0 1.0
        %319 = vmatprep.subr.mxu0 0.0
        %320 = vmatpush1.msra.mxu0 1.0
        %321 = vmatprep.subr.mxu0 0.0
        %322 = vmatpush1.msra.mxu0 1.0
        %323 = vmatprep.subr.mxu0 0.0
        %324 = vmatpush1.msra.mxu0 1.0
        %325 = vmatprep.subr.mxu0 0.0
        %326 = vmatpush1.msra.mxu0 1.0
        %327 = vmatprep.subr.mxu0 0.0
        %328 = vmatpush1.msra.mxu0 1.0
        %329 = vmatprep.subr.mxu0 0.0
        %330 = vmatpush1.msra.mxu0 1.0
        %331 = vmatprep.subr.mxu0 0.0
        %332 = vmatpush1.msra.mxu0 1.0
        %333 = vmatprep.subr.mxu0 0.0
        %334 = vmatpush1.msra.mxu0 1.0
        %335 = vmatprep.subr.mxu0 0.0
        %336 = vmatpush1.msra.mxu0 1.0
        %337 = vmatprep.subr.mxu0 0.0
        %338 = vmatpush1.msra.mxu0 1.0
        %339 = vmatprep.subr.mxu0 0.0
        %340 = vmatpush1.msra.mxu0 1.0
        %341 = vmatprep.subr.mxu0 0.0
        %342 = vmatpush1.msra.mxu0 1.0
        %343 = vmatprep.subr.mxu0 0.0
        %344 = vmatpush1.msra.mxu0 1.0
        %345 = vmatprep.subr.mxu0 0.0
        %346 = vmatpush1.msra.mxu0 0.0
        %347 = vmatprep.subr.mxu0 0.0
        %348 = vmatpush1.msra.mxu0 0.0
        %349 = vmatprep.subr.mxu0 0.0
        %350 = vmatpush1.msra.mxu0 0.0
        %351 = vmatprep.subr.mxu0 0.0
        %352 = vmatpush1.msra.mxu0 0.0
        %353 = vmatprep.subr.mxu0 0.0
        %354 = vmatpush1.msra.mxu0 0.0
        %355 = vmatprep.subr.mxu0 0.0
        %356 = vmatpush1.msra.mxu0 0.0
        %357 = vmatprep.subr.mxu0 0.0
        %358 = vmatpush1.msra.mxu0 0.0
        %359 = vmatprep.subr.mxu0 0.0
        %360 = vmatpush1.msra.mxu0 0.0
        %361 = vmatprep.subr.mxu0 0.0
        %362 = vmatpush1.msra.mxu0 0.0
        %363 = vmatprep.subr.mxu0 0.0
        %364 = vmatpush1.msra.mxu0 0.0
        %365 = vmatprep.subr.mxu0 0.0
        %366 = vmatpush1.msra.mxu0 0.0
        %367 = vmatprep.subr.mxu0 0.0
        %368 = vmatpush1.msra.mxu0 0.0
        %369 = vmatprep.subr.mxu0 0.0
        %370 = vmatpush1.msra.mxu0 0.0
        %371 = vmatprep.subr.mxu0 0.0
        %372 = vmatpush1.msra.mxu0 0.0
        %373 = vmatprep.subr.mxu0 0.0
        %374 = vmatpush1.msra.mxu0 0.0
        %375 = vmatprep.subr.mxu0 0.0
        %376 = vmatpush1.msra.mxu0 0.0
        %377 = vmatprep.mubr.f32.mxu0 0.0
        %v378 = vand.u32 %v312, 4294901760
        %v379 = vsub.f32 %v312, %v378
        %v380 = vand.u32 %v379, 4294901760
        %v381 = vsub.f32 %v379, %v380
        %v382 = vand.u32 %v381, 4294901760
        %383 = vmatmul.mubr.f32.gmra.mrb[0].mxu0 %v382
        %v384 = vpop.f32.mrb[0].mxu0
        %v385 = vadd.f32 0.0, %v384
        %v386 = vpop.f32.mrb[0].mxu0
        %387 = vdwg.mxu0
        %388 = vmatprep.subr.mxu0 0.0
        %389 = vmatpush1.msra.mxu0 0.0
        %390 = vmatprep.subr.mxu0 0.0
        %391 = vmatpush1.msra.mxu0 0.0
        %392 = vmatprep.subr.mxu0 0.0
        %393 = vmatpush1.msra.mxu0 0.0
        %394 = vmatprep.subr.mxu0 0.0
        %395 = vmatpush1.msra.mxu0 0.0
        %396 = vmatprep.subr.mxu0 0.0
        %397 = vmatpush1.msra.mxu0 0.0
        %398 = vmatprep.subr.mxu0 0.0
        %399 = vmatpush1.msra.mxu0 0.0
        %400 = vmatprep.subr.mxu0 0.0
        %401 = vmatpush1.msra.mxu0 0.0
        %402 = vmatprep.subr.mxu0 0.0
        %403 = vmatpush1.msra.mxu0 0.0
        %404 = vmatprep.subr.mxu0 0.0
        %405 = vmatpush1.msra.mxu0 0.0
        %406 = vmatprep.subr.mxu0 0.0
        %407 = vmatpush1.msra.mxu0 0.0
        %408 = vmatprep.subr.mxu0 0.0
        %409 = vmatpush1.msra.mxu0 0.0
        %410 = vmatprep.subr.mxu0 0.0
        %411 = vmatpush1.msra.mxu0 0.0
        %412 = vmatprep.subr.mxu0 0.0
        %413 = vmatpush1.msra.mxu0 0.0
        %414 = vmatprep.subr.mxu0 0.0
        %415 = vmatpush1.msra.mxu0 0.0
        %416 = vmatprep.subr.mxu0 0.0
        %417 = vmatpush1.msra.mxu0 0.0
        %418 = vmatprep.subr.mxu0 0.0
        %419 = vmatpush1.msra.mxu0 0.0
        %420 = vmatprep.subr.mxu0 0.0
        %421 = vmatpush1.msra.mxu0 0.0
        %422 = vmatprep.subr.mxu0 0.0
        %423 = vmatpush1.msra.mxu0 0.0
        %424 = vmatprep.subr.mxu0 0.0
        %425 = vmatpush1.msra.mxu0 0.0
        %426 = vmatprep.subr.mxu0 0.0
        %427 = vmatpush1.msra.mxu0 0.0
        %428 = vmatprep.subr.mxu0 0.0
        %429 = vmatpush1.msra.mxu0 0.0
        %430 = vmatprep.subr.mxu0 0.0
        %431 = vmatpush1.msra.mxu0 0.0
        %432 = vmatprep.subr.mxu0 0.0
        %433 = vmatpush1.msra.mxu0 0.0
        %434 = vmatprep.subr.mxu0 0.0
        %435 = vmatpush1.msra.mxu0 0.0
        %436 = vmatprep.subr.mxu0 0.0
        %437 = vmatpush1.msra.mxu0 0.0
        %438 = vmatprep.subr.mxu0 0.0
        %439 = vmatpush1.msra.mxu0 0.0
        %440 = vmatprep.subr.mxu0 0.0
        %441 = vmatpush1.msra.mxu0 0.0
        %442 = vmatprep.subr.mxu0 0.0
        %443 = vmatpush1.msra.mxu0 0.0
        %444 = vmatprep.subr.mxu0 0.0
        %445 = vmatpush1.msra.mxu0 0.0
        %446 = vmatprep.subr.mxu0 0.0
        %447 = vmatpush1.msra.mxu0 0.0
        %448 = vmatprep.subr.mxu0 0.0
        %449 = vmatpush1.msra.mxu0 0.0
        %450 = vmatprep.subr.mxu0 0.0
        %451 = vmatpush1.msra.mxu0 0.0
        %452 = vmatprep.mubr.f32.mxu0 0.0
        %v453 = vand.u32 %v312, 4294901760
        %454 = vmatmul.mubr.f32.gmra.mrb[0].mxu0 %v453
        %v455 = vpop.f32.mrb[0].mxu0
        %v456 = vadd.f32 %v385, %v455
        %v457 = vpop.f32.mrb[0].mxu0
        %458 = vdwg.mxu0
        %459 = vmatprep.subr.mxu0 0.0
        %460 = vmatpush1.msra.mxu0 0.0
        %461 = vmatprep.subr.mxu0 0.0
        %462 = vmatpush1.msra.mxu0 0.0
        %463 = vmatprep.subr.mxu0 0.0
        %464 = vmatpush1.msra.mxu0 0.0
        %465 = vmatprep.subr.mxu0 0.0
        %466 = vmatpush1.msra.mxu0 0.0
        %467 = vmatprep.subr.mxu0 0.0
        %468 = vmatpush1.msra.mxu0 0.0
        %469 = vmatprep.subr.mxu0 0.0
        %470 = vmatpush1.msra.mxu0 0.0
        %471 = vmatprep.subr.mxu0 0.0
        %472 = vmatpush1.msra.mxu0 0.0
        %473 = vmatprep.subr.mxu0 0.0
        %474 = vmatpush1.msra.mxu0 0.0
        %475 = vmatprep.subr.mxu0 0.0
        %476 = vmatpush1.msra.mxu0 0.0
        %477 = vmatprep.subr.mxu0 0.0
        %478 = vmatpush1.msra.mxu0 0.0
        %479 = vmatprep.subr.mxu0 0.0
        %480 = vmatpush1.msra.mxu0 0.0
        %481 = vmatprep.subr.mxu0 0.0
        %482 = vmatpush1.msra.mxu0 0.0
        %483 = vmatprep.subr.mxu0 0.0
        %484 = vmatpush1.msra.mxu0 0.0
        %485 = vmatprep.subr.mxu0 0.0
        %486 = vmatpush1.msra.mxu0 0.0
        %487 = vmatprep.subr.mxu0 0.0
        %488 = vmatpush1.msra.mxu0 0.0
        %489 = vmatprep.subr.mxu0 0.0
        %490 = vmatpush1.msra.mxu0 0.0
        %491 = vmatprep.subr.mxu0 0.0
        %492 = vmatpush1.msra.mxu0 0.0
        %493 = vmatprep.subr.mxu0 0.0
        %494 = vmatpush1.msra.mxu0 0.0
        %495 = vmatprep.subr.mxu0 0.0
        %496 = vmatpush1.msra.mxu0 0.0
        %497 = vmatprep.subr.mxu0 0.0
        %498 = vmatpush1.msra.mxu0 0.0
        %499 = vmatprep.subr.mxu0 0.0
        %500 = vmatpush1.msra.mxu0 0.0
        %501 = vmatprep.subr.mxu0 0.0
        %502 = vmatpush1.msra.mxu0 0.0
        %503 = vmatprep.subr.mxu0 0.0
        %504 = vmatpush1.msra.mxu0 0.0
        %505 = vmatprep.subr.mxu0 0.0
        %506 = vmatpush1.msra.mxu0 0.0
        %507 = vmatprep.subr.mxu0 0.0
        %508 = vmatpush1.msra.mxu0 0.0
        %509 = vmatprep.subr.mxu0 0.0
        %510 = vmatpush1.msra.mxu0 0.0
        %511 = vmatprep.subr.mxu0 0.0
        %512 = vmatpush1.msra.mxu0 0.0
        %513 = vmatprep.subr.mxu0 0.0
        %514 = vmatpush1.msra.mxu0 0.0
        %515 = vmatprep.subr.mxu0 0.0
        %516 = vmatpush1.msra.mxu0 0.0
        %517 = vmatprep.subr.mxu0 0.0
        %518 = vmatpush1.msra.mxu0 0.0
        %519 = vmatprep.subr.mxu0 0.0
        %520 = vmatpush1.msra.mxu0 0.0
        %521 = vmatprep.subr.mxu0 0.0
        %522 = vmatpush1.msra.mxu0 0.0
        %523 = vmatprep.mubr.f32.mxu0 0.0
        %v524 = vand.u32 %v312, 4294901760
        %v525 = vsub.f32 %v312, %v524
        %526 = vmatmul.mubr.f32.gmra.mrb[0].mxu0 %v525
        %v527 = vpop.f32.mrb[0].mxu0
        %v528 = vadd.f32 %v456, %v527
        %v529 = vpop.f32.mrb[0].mxu0
        %530 = vdwg.mxu0
        %531 = vmatprep.subr.mxu0 0.0
        %532 = vmatpush1.msra.mxu0 1.0
        %533 = vmatprep.subr.mxu0 0.0
        %534 = vmatpush1.msra.mxu0 1.0
        %535 = vmatprep.subr.mxu0 0.0
        %536 = vmatpush1.msra.mxu0 1.0
        %537 = vmatprep.subr.mxu0 0.0
        %538 = vmatpush1.msra.mxu0 1.0
        %539 = vmatprep.subr.mxu0 0.0
        %540 = vmatpush1.msra.mxu0 1.0
        %541 = vmatprep.subr.mxu0 0.0
        %542 = vmatpush1.msra.mxu0 1.0
        %543 = vmatprep.subr.mxu0 0.0
        %544 = vmatpush1.msra.mxu0 1.0
        %545 = vmatprep.subr.mxu0 0.0
        %546 = vmatpush1.msra.mxu0 1.0
        %547 = vmatprep.subr.mxu0 0.0
        %548 = vmatpush1.msra.mxu0 1.0
        %549 = vmatprep.subr.mxu0 0.0
        %550 = vmatpush1.msra.mxu0 1.0
        %551 = vmatprep.subr.mxu0 0.0
        %552 = vmatpush1.msra.mxu0 1.0
        %553 = vmatprep.subr.mxu0 0.0
        %554 = vmatpush1.msra.mxu0 1.0
        %555 = vmatprep.subr.mxu0 0.0
        %556 = vmatpush1.msra.mxu0 1.0
        %557 = vmatprep.subr.mxu0 0.0
        %558 = vmatpush1.msra.mxu0 1.0
        %559 = vmatprep.subr.mxu0 0.0
        %560 = vmatpush1.msra.mxu0 1.0
        %561 = vmatprep.subr.mxu0 0.0
        %562 = vmatpush1.msra.mxu0 1.0
        %563 = vmatprep.subr.mxu0 0.0
        %564 = vmatpush1.msra.mxu0 0.0
        %565 = vmatprep.subr.mxu0 0.0
        %566 = vmatpush1.msra.mxu0 0.0
        %567 = vmatprep.subr.mxu0 0.0
        %568 = vmatpush1.msra.mxu0 0.0
        %569 = vmatprep.subr.mxu0 0.0
        %570 = vmatpush1.msra.mxu0 0.0
        %571 = vmatprep.subr.mxu0 0.0
        %572 = vmatpush1.msra.mxu0 0.0
        %573 = vmatprep.subr.mxu0 0.0
        %574 = vmatpush1.msra.mxu0 0.0
        %575 = vmatprep.subr.mxu0 0.0
        %576 = vmatpush1.msra.mxu0 0.0
        %577 = vmatprep.subr.mxu0 0.0
        %578 = vmatpush1.msra.mxu0 0.0
        %579 = vmatprep.subr.mxu0 0.0
        %580 = vmatpush1.msra.mxu0 0.0
        %581 = vmatprep.subr.mxu0 0.0
        %582 = vmatpush1.msra.mxu0 0.0
        %583 = vmatprep.subr.mxu0 0.0
        %584 = vmatpush1.msra.mxu0 0.0
        %585 = vmatprep.subr.mxu0 0.0
        %586 = vmatpush1.msra.mxu0 0.0
        %587 = vmatprep.subr.mxu0 0.0
        %588 = vmatpush1.msra.mxu0 0.0
        %589 = vmatprep.subr.mxu0 0.0
        %590 = vmatpush1.msra.mxu0 0.0
        %591 = vmatprep.subr.mxu0 0.0
        %592 = vmatpush1.msra.mxu0 0.0
        %593 = vmatprep.subr.mxu0 0.0
        %594 = vmatpush1.msra.mxu0 0.0
        %595 = vmatprep.mubr.f32.mxu0 0.0
        %v596 = vand.u32 %v312, 4294901760
        %v597 = vsub.f32 %v312, %v596
        %v598 = vand.u32 %v597, 4294901760
        %599 = vmatmul.mubr.f32.gmra.mrb[0].mxu0 %v598
        %v600 = vpop.f32.mrb[0].mxu0
        %v601 = vadd.f32 %v528, %v600
        %v602 = vpop.f32.mrb[0].mxu0
        %603 = vdwg.mxu0
        %604 = vmatprep.subr.mxu0 0.0
        %605 = vmatpush1.msra.mxu0 0.0
        %606 = vmatprep.subr.mxu0 0.0
        %607 = vmatpush1.msra.mxu0 0.0
        %608 = vmatprep.subr.mxu0 0.0
        %609 = vmatpush1.msra.mxu0 0.0
        %610 = vmatprep.subr.mxu0 0.0
        %611 = vmatpush1.msra.mxu0 0.0
        %612 = vmatprep.subr.mxu0 0.0
        %613 = vmatpush1.msra.mxu0 0.0
        %614 = vmatprep.subr.mxu0 0.0
        %615 = vmatpush1.msra.mxu0 0.0
        %616 = vmatprep.subr.mxu0 0.0
        %617 = vmatpush1.msra.mxu0 0.0
        %618 = vmatprep.subr.mxu0 0.0
        %619 = vmatpush1.msra.mxu0 0.0
        %620 = vmatprep.subr.mxu0 0.0
        %621 = vmatpush1.msra.mxu0 0.0
        %622 = vmatprep.subr.mxu0 0.0
        %623 = vmatpush1.msra.mxu0 0.0
        %624 = vmatprep.subr.mxu0 0.0
        %625 = vmatpush1.msra.mxu0 0.0
        %626 = vmatprep.subr.mxu0 0.0
        %627 = vmatpush1.msra.mxu0 0.0
        %628 = vmatprep.subr.mxu0 0.0
        %629 = vmatpush1.msra.mxu0 0.0
        %630 = vmatprep.subr.mxu0 0.0
        %631 = vmatpush1.msra.mxu0 0.0
        %632 = vmatprep.subr.mxu0 0.0
        %633 = vmatpush1.msra.mxu0 0.0
        %634 = vmatprep.subr.mxu0 0.0
        %635 = vmatpush1.msra.mxu0 0.0
        %636 = vmatprep.subr.mxu0 0.0
        %637 = vmatpush1.msra.mxu0 0.0
        %638 = vmatprep.subr.mxu0 0.0
        %639 = vmatpush1.msra.mxu0 0.0
        %640 = vmatprep.subr.mxu0 0.0
        %641 = vmatpush1.msra.mxu0 0.0
        %642 = vmatprep.subr.mxu0 0.0
        %643 = vmatpush1.msra.mxu0 0.0
        %644 = vmatprep.subr.mxu0 0.0
        %645 = vmatpush1.msra.mxu0 0.0
        %646 = vmatprep.subr.mxu0 0.0
        %647 = vmatpush1.msra.mxu0 0.0
        %648 = vmatprep.subr.mxu0 0.0
        %649 = vmatpush1.msra.mxu0 0.0
        %650 = vmatprep.subr.mxu0 0.0
        %651 = vmatpush1.msra.mxu0 0.0
        %652 = vmatprep.subr.mxu0 0.0
        %653 = vmatpush1.msra.mxu0 0.0
        %654 = vmatprep.subr.mxu0 0.0
        %655 = vmatpush1.msra.mxu0 0.0
        %656 = vmatprep.subr.mxu0 0.0
        %657 = vmatpush1.msra.mxu0 0.0
        %658 = vmatprep.subr.mxu0 0.0
        %659 = vmatpush1.msra.mxu0 0.0
        %660 = vmatprep.subr.mxu0 0.0
        %661 = vmatpush1.msra.mxu0 0.0
        %662 = vmatprep.subr.mxu0 0.0
        %663 = vmatpush1.msra.mxu0 0.0
        %664 = vmatprep.subr.mxu0 0.0
        %665 = vmatpush1.msra.mxu0 0.0
        %666 = vmatprep.subr.mxu0 0.0
        %667 = vmatpush1.msra.mxu0 0.0
        %668 = vmatprep.mubr.f32.mxu0 0.0
        %v669 = vand.u32 %v312, 4294901760
        %670 = vmatmul.mubr.f32.gmra.mrb[0].mxu0 %v669
        %v671 = vpop.f32.mrb[0].mxu0
        %v672 = vadd.f32 %v601, %v671
        %v673 = vpop.f32.mrb[0].mxu0
        %674 = vdwg.mxu0
        %675 = vmatprep.subr.mxu0 0.0
        %676 = vmatpush1.msra.mxu0 1.0
        %677 = vmatprep.subr.mxu0 0.0
        %678 = vmatpush1.msra.mxu0 1.0
        %679 = vmatprep.subr.mxu0 0.0
        %680 = vmatpush1.msra.mxu0 1.0
        %681 = vmatprep.subr.mxu0 0.0
        %682 = vmatpush1.msra.mxu0 1.0
        %683 = vmatprep.subr.mxu0 0.0
        %684 = vmatpush1.msra.mxu0 1.0
        %685 = vmatprep.subr.mxu0 0.0
        %686 = vmatpush1.msra.mxu0 1.0
        %687 = vmatprep.subr.mxu0 0.0
        %688 = vmatpush1.msra.mxu0 1.0
        %689 = vmatprep.subr.mxu0 0.0
        %690 = vmatpush1.msra.mxu0 1.0
        %691 = vmatprep.subr.mxu0 0.0
        %692 = vmatpush1.msra.mxu0 1.0
        %693 = vmatprep.subr.mxu0 0.0
        %694 = vmatpush1.msra.mxu0 1.0
        %695 = vmatprep.subr.mxu0 0.0
        %696 = vmatpush1.msra.mxu0 1.0
        %697 = vmatprep.subr.mxu0 0.0
        %698 = vmatpush1.msra.mxu0 1.0
        %699 = vmatprep.subr.mxu0 0.0
        %700 = vmatpush1.msra.mxu0 1.0
        %701 = vmatprep.subr.mxu0 0.0
        %702 = vmatpush1.msra.mxu0 1.0
        %703 = vmatprep.subr.mxu0 0.0
        %704 = vmatpush1.msra.mxu0 1.0
        %705 = vmatprep.subr.mxu0 0.0
        %706 = vmatpush1.msra.mxu0 1.0
        %707 = vmatprep.subr.mxu0 0.0
        %708 = vmatpush1.msra.mxu0 0.0
        %709 = vmatprep.subr.mxu0 0.0
        %710 = vmatpush1.msra.mxu0 0.0
        %711 = vmatprep.subr.mxu0 0.0
        %712 = vmatpush1.msra.mxu0 0.0
        %713 = vmatprep.subr.mxu0 0.0
        %714 = vmatpush1.msra.mxu0 0.0
        %715 = vmatprep.subr.mxu0 0.0
        %716 = vmatpush1.msra.mxu0 0.0
        %717 = vmatprep.subr.mxu0 0.0
        %718 = vmatpush1.msra.mxu0 0.0
        %719 = vmatprep.subr.mxu0 0.0
        %720 = vmatpush1.msra.mxu0 0.0
        %721 = vmatprep.subr.mxu0 0.0
        %722 = vmatpush1.msra.mxu0 0.0
        %723 = vmatprep.subr.mxu0 0.0
        %724 = vmatpush1.msra.mxu0 0.0
        %725 = vmatprep.subr.mxu0 0.0
        %726 = vmatpush1.msra.mxu0 0.0
        %727 = vmatprep.subr.mxu0 0.0
        %728 = vmatpush1.msra.mxu0 0.0
        %729 = vmatprep.subr.mxu0 0.0
        %730 = vmatpush1.msra.mxu0 0.0
        %731 = vmatprep.subr.mxu0 0.0
        %732 = vmatpush1.msra.mxu0 0.0
        %733 = vmatprep.subr.mxu0 0.0
        %734 = vmatpush1.msra.mxu0 0.0
        %735 = vmatprep.subr.mxu0 0.0
        %736 = vmatpush1.msra.mxu0 0.0
        %737 = vmatprep.subr.mxu0 0.0
        %738 = vmatpush1.msra.mxu0 0.0
        %739 = vmatprep.mubr.f32.mxu0 0.0
        %v740 = vand.u32 %v312, 4294901760
        %741 = vmatmul.mubr.f32.gmra.mrb[0].mxu0 %v740
        %v742 = vpop.f32.mrb[0].mxu0
        %v743 = vadd.f32 %v672, %v742
        %v744 = vpop.f32.mrb[0].mxu0
        %745 = vdwg.mxu0
        %v746 = vrcp.pop %v743
        %v747 = vmul.f32 1.0, %v746
        %749 = vset.pattern.permute.xlu0 0
        %750 = vperm.xlu0 %749, %v747
        %v751 = vpop.permute.xlu0 %750
        %v753 = vmul.f32 %v312, %v751
        %v754 = vxor.u32 %v251, 3668340011
        %v755 = vadd.s32 %v754, %v255
        %v756 = vshrl.u32 %v755, 16
        %v757 = vxor.u32 %v755, %v756
        %v758 = vmul.u32 %v757, 2146121005
        %v759 = vshrl.u32 %v758, 15
        %v760 = vxor.u32 %v758, %v759
        %v761 = vmul.u32 %v760, 2221713035
        %v762 = vshrl.u32 %v761, 16
        %v763 = vxor.u32 %v761, %v762
        %v764 = vshrl.u32 %v763, 8
        %v765 = vcvt.s32.f32 %v764
        %v766 = vmul.f32 %v765, 5.9604645e-08
        %v767 = vadd.f32 %v766, 1e-10
        %v768 = vlog2.pop %v767
        %v769 = vmul.f32 %v768, 0.6931472
        %v770 = vsub.f32 0.0, %v769
        %v771 = vadd.f32 %v770, 1e-10
        %v772 = vlog2.pop %v771
        %v773 = vmul.f32 %v772, 0.6931472
        %v774 = vsub.f32 0.0, %v773
        %v775 = vadd.f32 %v285, %v774
        %776 = vmax.xlane.f32.xlu0 %v775
        %v777 = vpop.xlane.xlu0 %776
        %v778 = vsub.f32 %v775, %v777
        %v779 = vmul.f32 %v778, 1.442695
        %v780 = vpow.pop %v779
        %781 = vmatprep.subr.mxu0 0.0
        %782 = vmatpush1.msra.mxu0 1.0
        %783 = vmatprep.subr.mxu0 0.0
        %784 = vmatpush1.msra.mxu0 1.0
        %785 = vmatprep.subr.mxu0 0.0
        %786 = vmatpush1.msra.mxu0 1.0
        %787 = vmatprep.subr.mxu0 0.0
        %788 = vmatpush1.msra.mxu0 1.0
        %789 = vmatprep.subr.mxu0 0.0
        %790 = vmatpush1.msra.mxu0 1.0
        %791 = vmatprep.subr.mxu0 0.0
        %792 = vmatpush1.msra.mxu0 1.0
        %793 = vmatprep.subr.mxu0 0.0
        %794 = vmatpush1.msra.mxu0 1.0
        %795 = vmatprep.subr.mxu0 0.0
        %796 = vmatpush1.msra.mxu0 1.0
        %797 = vmatprep.subr.mxu0 0.0
        %798 = vmatpush1.msra.mxu0 1.0
        %799 = vmatprep.subr.mxu0 0.0
        %800 = vmatpush1.msra.mxu0 1.0
        %801 = vmatprep.subr.mxu0 0.0
        %802 = vmatpush1.msra.mxu0 1.0
        %803 = vmatprep.subr.mxu0 0.0
        %804 = vmatpush1.msra.mxu0 1.0
        %805 = vmatprep.subr.mxu0 0.0
        %806 = vmatpush1.msra.mxu0 1.0
        %807 = vmatprep.subr.mxu0 0.0
        %808 = vmatpush1.msra.mxu0 1.0
        %809 = vmatprep.subr.mxu0 0.0
        %810 = vmatpush1.msra.mxu0 1.0
        %811 = vmatprep.subr.mxu0 0.0
        %812 = vmatpush1.msra.mxu0 1.0
        %813 = vmatprep.subr.mxu0 0.0
        %814 = vmatpush1.msra.mxu0 0.0
        %815 = vmatprep.subr.mxu0 0.0
        %816 = vmatpush1.msra.mxu0 0.0
        %817 = vmatprep.subr.mxu0 0.0
        %818 = vmatpush1.msra.mxu0 0.0
        %819 = vmatprep.subr.mxu0 0.0
        %820 = vmatpush1.msra.mxu0 0.0
        %821 = vmatprep.subr.mxu0 0.0
        %822 = vmatpush1.msra.mxu0 0.0
        %823 = vmatprep.subr.mxu0 0.0
        %824 = vmatpush1.msra.mxu0 0.0
        %825 = vmatprep.subr.mxu0 0.0
        %826 = vmatpush1.msra.mxu0 0.0
        %827 = vmatprep.subr.mxu0 0.0
        %828 = vmatpush1.msra.mxu0 0.0
        %829 = vmatprep.subr.mxu0 0.0
        %830 = vmatpush1.msra.mxu0 0.0
        %831 = vmatprep.subr.mxu0 0.0
        %832 = vmatpush1.msra.mxu0 0.0
        %833 = vmatprep.subr.mxu0 0.0
        %834 = vmatpush1.msra.mxu0 0.0
        %835 = vmatprep.subr.mxu0 0.0
        %836 = vmatpush1.msra.mxu0 0.0
        %837 = vmatprep.subr.mxu0 0.0
        %838 = vmatpush1.msra.mxu0 0.0
        %839 = vmatprep.subr.mxu0 0.0
        %840 = vmatpush1.msra.mxu0 0.0
        %841 = vmatprep.subr.mxu0 0.0
        %842 = vmatpush1.msra.mxu0 0.0
        %843 = vmatprep.subr.mxu0 0.0
        %844 = vmatpush1.msra.mxu0 0.0
        %845 = vmatprep.mubr.f32.mxu0 0.0
        %v846 = vand.u32 %v780, 4294901760
        %v847 = vsub.f32 %v780, %v846
        %v848 = vand.u32 %v847, 4294901760
        %v849 = vsub.f32 %v847, %v848
        %v850 = vand.u32 %v849, 4294901760
        %851 = vmatmul.mubr.f32.gmra.mrb[0].mxu0 %v850
        %v852 = vpop.f32.mrb[0].mxu0
        %v853 = vadd.f32 0.0, %v852
        %v854 = vpop.f32.mrb[0].mxu0
        %855 = vdwg.mxu0
        %856 = vmatprep.subr.mxu0 0.0
        %857 = vmatpush1.msra.mxu0 0.0
        %858 = vmatprep.subr.mxu0 0.0
        %859 = vmatpush1.msra.mxu0 0.0
        %860 = vmatprep.subr.mxu0 0.0
        %861 = vmatpush1.msra.mxu0 0.0
        %862 = vmatprep.subr.mxu0 0.0
        %863 = vmatpush1.msra.mxu0 0.0
        %864 = vmatprep.subr.mxu0 0.0
        %865 = vmatpush1.msra.mxu0 0.0
        %866 = vmatprep.subr.mxu0 0.0
        %867 = vmatpush1.msra.mxu0 0.0
        %868 = vmatprep.subr.mxu0 0.0
        %869 = vmatpush1.msra.mxu0 0.0
        %870 = vmatprep.subr.mxu0 0.0
        %871 = vmatpush1.msra.mxu0 0.0
        %872 = vmatprep.subr.mxu0 0.0
        %873 = vmatpush1.msra.mxu0 0.0
        %874 = vmatprep.subr.mxu0 0.0
        %875 = vmatpush1.msra.mxu0 0.0
        %876 = vmatprep.subr.mxu0 0.0
        %877 = vmatpush1.msra.mxu0 0.0
        %878 = vmatprep.subr.mxu0 0.0
        %879 = vmatpush1.msra.mxu0 0.0
        %880 = vmatprep.subr.mxu0 0.0
        %881 = vmatpush1.msra.mxu0 0.0
        %882 = vmatprep.subr.mxu0 0.0
        %883 = vmatpush1.msra.mxu0 0.0
        %884 = vmatprep.subr.mxu0 0.0
        %885 = vmatpush1.msra.mxu0 0.0
        %886 = vmatprep.subr.mxu0 0.0
        %887 = vmatpush1.msra.mxu0 0.0
        %888 = vmatprep.subr.mxu0 0.0
        %889 = vmatpush1.msra.mxu0 0.0
        %890 = vmatprep.subr.mxu0 0.0
        %891 = vmatpush1.msra.mxu0 0.0
        %892 = vmatprep.subr.mxu0 0.0
        %893 = vmatpush1.msra.mxu0 0.0
        %894 = vmatprep.subr.mxu0 0.0
        %895 = vmatpush1.msra.mxu0 0.0
        %896 = vmatprep.subr.mxu0 0.0
        %897 = vmatpush1.msra.mxu0 0.0
        %898 = vmatprep.subr.mxu0 0.0
        %899 = vmatpush1.msra.mxu0 0.0
        %900 = vmatprep.subr.mxu0 0.0
        %901 = vmatpush1.msra.mxu0 0.0
        %902 = vmatprep.subr.mxu0 0.0
        %903 = vmatpush1.msra.mxu0 0.0
        %904 = vmatprep.subr.mxu0 0.0
        %905 = vmatpush1.msra.mxu0 0.0
        %906 = vmatprep.subr.mxu0 0.0
        %907 = vmatpush1.msra.mxu0 0.0
        %908 = vmatprep.subr.mxu0 0.0
        %909 = vmatpush1.msra.mxu0 0.0
        %910 = vmatprep.subr.mxu0 0.0
        %911 = vmatpush1.msra.mxu0 0.0
        %912 = vmatprep.subr.mxu0 0.0
        %913 = vmatpush1.msra.mxu0 0.0
        %914 = vmatprep.subr.mxu0 0.0
        %915 = vmatpush1.msra.mxu0 0.0
        %916 = vmatprep.subr.mxu0 0.0
        %917 = vmatpush1.msra.mxu0 0.0
        %918 = vmatprep.subr.mxu0 0.0
        %919 = vmatpush1.msra.mxu0 0.0
        %920 = vmatprep.mubr.f32.mxu0 0.0
        %v921 = vand.u32 %v780, 4294901760
        %922 = vmatmul.mubr.f32.gmra.mrb[0].mxu0 %v921
        %v923 = vpop.f32.mrb[0].mxu0
        %v924 = vadd.f32 %v853, %v923
        %v925 = vpop.f32.mrb[0].mxu0
        %926 = vdwg.mxu0
        %927 = vmatprep.subr.mxu0 0.0
        %928 = vmatpush1.msra.mxu0 0.0
        %929 = vmatprep.subr.mxu0 0.0
        %930 = vmatpush1.msra.mxu0 0.0
        %931 = vmatprep.subr.mxu0 0.0
        %932 = vmatpush1.msra.mxu0 0.0
        %933 = vmatprep.subr.mxu0 0.0
        %934 = vmatpush1.msra.mxu0 0.0
        %935 = vmatprep.subr.mxu0 0.0
        %936 = vmatpush1.msra.mxu0 0.0
        %937 = vmatprep.subr.mxu0 0.0
        %938 = vmatpush1.msra.mxu0 0.0
        %939 = vmatprep.subr.mxu0 0.0
        %940 = vmatpush1.msra.mxu0 0.0
        %941 = vmatprep.subr.mxu0 0.0
        %942 = vmatpush1.msra.mxu0 0.0
        %943 = vmatprep.subr.mxu0 0.0
        %944 = vmatpush1.msra.mxu0 0.0
        %945 = vmatprep.subr.mxu0 0.0
        %946 = vmatpush1.msra.mxu0 0.0
        %947 = vmatprep.subr.mxu0 0.0
        %948 = vmatpush1.msra.mxu0 0.0
        %949 = vmatprep.subr.mxu0 0.0
        %950 = vmatpush1.msra.mxu0 0.0
        %951 = vmatprep.subr.mxu0 0.0
        %952 = vmatpush1.msra.mxu0 0.0
        %953 = vmatprep.subr.mxu0 0.0
        %954 = vmatpush1.msra.mxu0 0.0
        %955 = vmatprep.subr.mxu0 0.0
        %956 = vmatpush1.msra.mxu0 0.0
        %957 = vmatprep.subr.mxu0 0.0
        %958 = vmatpush1.msra.mxu0 0.0
        %959 = vmatprep.subr.mxu0 0.0
        %960 = vmatpush1.msra.mxu0 0.0
        %961 = vmatprep.subr.mxu0 0.0
        %962 = vmatpush1.msra.mxu0 0.0
        %963 = vmatprep.subr.mxu0 0.0
        %964 = vmatpush1.msra.mxu0 0.0
        %965 = vmatprep.subr.mxu0 0.0
        %966 = vmatpush1.msra.mxu0 0.0
        %967 = vmatprep.subr.mxu0 0.0
        %968 = vmatpush1.msra.mxu0 0.0
        %969 = vmatprep.subr.mxu0 0.0
        %970 = vmatpush1.msra.mxu0 0.0
        %971 = vmatprep.subr.mxu0 0.0
        %972 = vmatpush1.msra.mxu0 0.0
        %973 = vmatprep.subr.mxu0 0.0
        %974 = vmatpush1.msra.mxu0 0.0
        %975 = vmatprep.subr.mxu0 0.0
        %976 = vmatpush1.msra.mxu0 0.0
        %977 = vmatprep.subr.mxu0 0.0
        %978 = vmatpush1.msra.mxu0 0.0
        %979 = vmatprep.subr.mxu0 0.0
        %980 = vmatpush1.msra.mxu0 0.0
        %981 = vmatprep.subr.mxu0 0.0
        %982 = vmatpush1.msra.mxu0 0.0
        %983 = vmatprep.subr.mxu0 0.0
        %984 = vmatpush1.msra.mxu0 0.0
        %985 = vmatprep.subr.mxu0 0.0
        %986 = vmatpush1.msra.mxu0 0.0
        %987 = vmatprep.subr.mxu0 0.0
        %988 = vmatpush1.msra.mxu0 0.0
        %989 = vmatprep.subr.mxu0 0.0
        %990 = vmatpush1.msra.mxu0 0.0
        %991 = vmatprep.mubr.f32.mxu0 0.0
        %v992 = vand.u32 %v780, 4294901760
        %v993 = vsub.f32 %v780, %v992
        %994 = vmatmul.mubr.f32.gmra.mrb[0].mxu0 %v993
        %v995 = vpop.f32.mrb[0].mxu0
        %v996 = vadd.f32 %v924, %v995
        %v997 = vpop.f32.mrb[0].mxu0
        %998 = vdwg.mxu0
        %999 = vmatprep.subr.mxu0 0.0
        %1000 = vmatpush1.msra.mxu0 1.0
        %1001 = vmatprep.subr.mxu0 0.0
        %1002 = vmatpush1.msra.mxu0 1.0
        %1003 = vmatprep.subr.mxu0 0.0
        %1004 = vmatpush1.msra.mxu0 1.0
        %1005 = vmatprep.subr.mxu0 0.0
        %1006 = vmatpush1.msra.mxu0 1.0
        %1007 = vmatprep.subr.mxu0 0.0
        %1008 = vmatpush1.msra.mxu0 1.0
        %1009 = vmatprep.subr.mxu0 0.0
        %1010 = vmatpush1.msra.mxu0 1.0
        %1011 = vmatprep.subr.mxu0 0.0
        %1012 = vmatpush1.msra.mxu0 1.0
        %1013 = vmatprep.subr.mxu0 0.0
        %1014 = vmatpush1.msra.mxu0 1.0
        %1015 = vmatprep.subr.mxu0 0.0
        %1016 = vmatpush1.msra.mxu0 1.0
        %1017 = vmatprep.subr.mxu0 0.0
        %1018 = vmatpush1.msra.mxu0 1.0
        %1019 = vmatprep.subr.mxu0 0.0
        %1020 = vmatpush1.msra.mxu0 1.0
        %1021 = vmatprep.subr.mxu0 0.0
        %1022 = vmatpush1.msra.mxu0 1.0
        %1023 = vmatprep.subr.mxu0 0.0
        %1024 = vmatpush1.msra.mxu0 1.0
        %1025 = vmatprep.subr.mxu0 0.0
        %1026 = vmatpush1.msra.mxu0 1.0
        %1027 = vmatprep.subr.mxu0 0.0
        %1028 = vmatpush1.msra.mxu0 1.0
        %1029 = vmatprep.subr.mxu0 0.0
        %1030 = vmatpush1.msra.mxu0 1.0
        %1031 = vmatprep.subr.mxu0 0.0
        %1032 = vmatpush1.msra.mxu0 0.0
        %1033 = vmatprep.subr.mxu0 0.0
        %1034 = vmatpush1.msra.mxu0 0.0
        %1035 = vmatprep.subr.mxu0 0.0
        %1036 = vmatpush1.msra.mxu0 0.0
        %1037 = vmatprep.subr.mxu0 0.0
        %1038 = vmatpush1.msra.mxu0 0.0
        %1039 = vmatprep.subr.mxu0 0.0
        %1040 = vmatpush1.msra.mxu0 0.0
        %1041 = vmatprep.subr.mxu0 0.0
        %1042 = vmatpush1.msra.mxu0 0.0
        %1043 = vmatprep.subr.mxu0 0.0
        %1044 = vmatpush1.msra.mxu0 0.0
        %1045 = vmatprep.subr.mxu0 0.0
        %1046 = vmatpush1.msra.mxu0 0.0
        %1047 = vmatprep.subr.mxu0 0.0
        %1048 = vmatpush1.msra.mxu0 0.0
        %1049 = vmatprep.subr.mxu0 0.0
        %1050 = vmatpush1.msra.mxu0 0.0
        %1051 = vmatprep.subr.mxu0 0.0
        %1052 = vmatpush1.msra.mxu0 0.0
        %1053 = vmatprep.subr.mxu0 0.0
        %1054 = vmatpush1.msra.mxu0 0.0
        %1055 = vmatprep.subr.mxu0 0.0
        %1056 = vmatpush1.msra.mxu0 0.0
        %1057 = vmatprep.subr.mxu0 0.0
        %1058 = vmatpush1.msra.mxu0 0.0
        %1059 = vmatprep.subr.mxu0 0.0
        %1060 = vmatpush1.msra.mxu0 0.0
        %1061 = vmatprep.subr.mxu0 0.0
        %1062 = vmatpush1.msra.mxu0 0.0
        %1063 = vmatprep.mubr.f32.mxu0 0.0
        %v1064 = vand.u32 %v780, 4294901760
        %v1065 = vsub.f32 %v780, %v1064
        %v1066 = vand.u32 %v1065, 4294901760
        %1067 = vmatmul.mubr.f32.gmra.mrb[0].mxu0 %v1066
        %v1068 = vpop.f32.mrb[0].mxu0
        %v1069 = vadd.f32 %v996, %v1068
        %v1070 = vpop.f32.mrb[0].mxu0
        %1071 = vdwg.mxu0
        %1072 = vmatprep.subr.mxu0 0.0
        %1073 = vmatpush1.msra.mxu0 0.0
        %1074 = vmatprep.subr.mxu0 0.0
        %1075 = vmatpush1.msra.mxu0 0.0
        %1076 = vmatprep.subr.mxu0 0.0
        %1077 = vmatpush1.msra.mxu0 0.0
        %1078 = vmatprep.subr.mxu0 0.0
        %1079 = vmatpush1.msra.mxu0 0.0
        %1080 = vmatprep.subr.mxu0 0.0
        %1081 = vmatpush1.msra.mxu0 0.0
        %1082 = vmatprep.subr.mxu0 0.0
        %1083 = vmatpush1.msra.mxu0 0.0
        %1084 = vmatprep.subr.mxu0 0.0
        %1085 = vmatpush1.msra.mxu0 0.0
        %1086 = vmatprep.subr.mxu0 0.0
        %1087 = vmatpush1.msra.mxu0 0.0
        %1088 = vmatprep.subr.mxu0 0.0
        %1089 = vmatpush1.msra.mxu0 0.0
        %1090 = vmatprep.subr.mxu0 0.0
        %1091 = vmatpush1.msra.mxu0 0.0
        %1092 = vmatprep.subr.mxu0 0.0
        %1093 = vmatpush1.msra.mxu0 0.0
        %1094 = vmatprep.subr.mxu0 0.0
        %1095 = vmatpush1.msra.mxu0 0.0
        %1096 = vmatprep.subr.mxu0 0.0
        %1097 = vmatpush1.msra.mxu0 0.0
        %1098 = vmatprep.subr.mxu0 0.0
        %1099 = vmatpush1.msra.mxu0 0.0
        %1100 = vmatprep.subr.mxu0 0.0
        %1101 = vmatpush1.msra.mxu0 0.0
        %1102 = vmatprep.subr.mxu0 0.0
        %1103 = vmatpush1.msra.mxu0 0.0
        %1104 = vmatprep.subr.mxu0 0.0
        %1105 = vmatpush1.msra.mxu0 0.0
        %1106 = vmatprep.subr.mxu0 0.0
        %1107 = vmatpush1.msra.mxu0 0.0
        %1108 = vmatprep.subr.mxu0 0.0
        %1109 = vmatpush1.msra.mxu0 0.0
        %1110 = vmatprep.subr.mxu0 0.0
        %1111 = vmatpush1.msra.mxu0 0.0
        %1112 = vmatprep.subr.mxu0 0.0
        %1113 = vmatpush1.msra.mxu0 0.0
        %1114 = vmatprep.subr.mxu0 0.0
        %1115 = vmatpush1.msra.mxu0 0.0
        %1116 = vmatprep.subr.mxu0 0.0
        %1117 = vmatpush1.msra.mxu0 0.0
        %1118 = vmatprep.subr.mxu0 0.0
        %1119 = vmatpush1.msra.mxu0 0.0
        %1120 = vmatprep.subr.mxu0 0.0
        %1121 = vmatpush1.msra.mxu0 0.0
        %1122 = vmatprep.subr.mxu0 0.0
        %1123 = vmatpush1.msra.mxu0 0.0
        %1124 = vmatprep.subr.mxu0 0.0
        %1125 = vmatpush1.msra.mxu0 0.0
        %1126 = vmatprep.subr.mxu0 0.0
        %1127 = vmatpush1.msra.mxu0 0.0
        %1128 = vmatprep.subr.mxu0 0.0
        %1129 = vmatpush1.msra.mxu0 0.0
        %1130 = vmatprep.subr.mxu0 0.0
        %1131 = vmatpush1.msra.mxu0 0.0
        %1132 = vmatprep.subr.mxu0 0.0
        %1133 = vmatpush1.msra.mxu0 0.0
        %1134 = vmatprep.subr.mxu0 0.0
        %1135 = vmatpush1.msra.mxu0 0.0
        %1136 = vmatprep.mubr.f32.mxu0 0.0
        %v1137 = vand.u32 %v780, 4294901760
        %1138 = vmatmul.mubr.f32.gmra.mrb[0].mxu0 %v1137
        %v1139 = vpop.f32.mrb[0].mxu0
        %v1140 = vadd.f32 %v1069, %v1139
        %v1141 = vpop.f32.mrb[0].mxu0
        %1142 = vdwg.mxu0
        %1143 = vmatprep.subr.mxu0 0.0
        %1144 = vmatpush1.msra.mxu0 1.0
        %1145 = vmatprep.subr.mxu0 0.0
        %1146 = vmatpush1.msra.mxu0 1.0
        %1147 = vmatprep.subr.mxu0 0.0
        %1148 = vmatpush1.msra.mxu0 1.0
        %1149 = vmatprep.subr.mxu0 0.0
        %1150 = vmatpush1.msra.mxu0 1.0
        %1151 = vmatprep.subr.mxu0 0.0
        %1152 = vmatpush1.msra.mxu0 1.0
        %1153 = vmatprep.subr.mxu0 0.0
        %1154 = vmatpush1.msra.mxu0 1.0
        %1155 = vmatprep.subr.mxu0 0.0
        %1156 = vmatpush1.msra.mxu0 1.0
        %1157 = vmatprep.subr.mxu0 0.0
        %1158 = vmatpush1.msra.mxu0 1.0
        %1159 = vmatprep.subr.mxu0 0.0
        %1160 = vmatpush1.msra.mxu0 1.0
        %1161 = vmatprep.subr.mxu0 0.0
        %1162 = vmatpush1.msra.mxu0 1.0
        %1163 = vmatprep.subr.mxu0 0.0
        %1164 = vmatpush1.msra.mxu0 1.0
        %1165 = vmatprep.subr.mxu0 0.0
        %1166 = vmatpush1.msra.mxu0 1.0
        %1167 = vmatprep.subr.mxu0 0.0
        %1168 = vmatpush1.msra.mxu0 1.0
        %1169 = vmatprep.subr.mxu0 0.0
        %1170 = vmatpush1.msra.mxu0 1.0
        %1171 = vmatprep.subr.mxu0 0.0
        %1172 = vmatpush1.msra.mxu0 1.0
        %1173 = vmatprep.subr.mxu0 0.0
        %1174 = vmatpush1.msra.mxu0 1.0
        %1175 = vmatprep.subr.mxu0 0.0
        %1176 = vmatpush1.msra.mxu0 0.0
        %1177 = vmatprep.subr.mxu0 0.0
        %1178 = vmatpush1.msra.mxu0 0.0
        %1179 = vmatprep.subr.mxu0 0.0
        %1180 = vmatpush1.msra.mxu0 0.0
        %1181 = vmatprep.subr.mxu0 0.0
        %1182 = vmatpush1.msra.mxu0 0.0
        %1183 = vmatprep.subr.mxu0 0.0
        %1184 = vmatpush1.msra.mxu0 0.0
        %1185 = vmatprep.subr.mxu0 0.0
        %1186 = vmatpush1.msra.mxu0 0.0
        %1187 = vmatprep.subr.mxu0 0.0
        %1188 = vmatpush1.msra.mxu0 0.0
        %1189 = vmatprep.subr.mxu0 0.0
        %1190 = vmatpush1.msra.mxu0 0.0
        %1191 = vmatprep.subr.mxu0 0.0
        %1192 = vmatpush1.msra.mxu0 0.0
        %1193 = vmatprep.subr.mxu0 0.0
        %1194 = vmatpush1.msra.mxu0 0.0
        %1195 = vmatprep.subr.mxu0 0.0
        %1196 = vmatpush1.msra.mxu0 0.0
        %1197 = vmatprep.subr.mxu0 0.0
        %1198 = vmatpush1.msra.mxu0 0.0
        %1199 = vmatprep.subr.mxu0 0.0
        %1200 = vmatpush1.msra.mxu0 0.0
        %1201 = vmatprep.subr.mxu0 0.0
        %1202 = vmatpush1.msra.mxu0 0.0
        %1203 = vmatprep.subr.mxu0 0.0
        %1204 = vmatpush1.msra.mxu0 0.0
        %1205 = vmatprep.subr.mxu0 0.0
        %1206 = vmatpush1.msra.mxu0 0.0
        %1207 = vmatprep.mubr.f32.mxu0 0.0
        %v1208 = vand.u32 %v780, 4294901760
        %1209 = vmatmul.mubr.f32.gmra.mrb[0].mxu0 %v1208
        %v1210 = vpop.f32.mrb[0].mxu0
        %v1211 = vadd.f32 %v1140, %v1210
        %v1212 = vpop.f32.mrb[0].mxu0
        %1213 = vdwg.mxu0
        %v1214 = vrcp.pop %v1211
        %v1215 = vmul.f32 1.0, %v1214
        %1217 = vset.pattern.permute.xlu0 0
        %1218 = vperm.xlu0 %1217, %v1215
        %v1219 = vpop.permute.xlu0 %1218
        %v1221 = vmul.f32 %v780, %v1219
        %v1222 = vxor.u32 %v251, 2027808484
        %v1223 = vadd.s32 %v1222, %v255
        %v1224 = vshrl.u32 %v1223, 16
        %v1225 = vxor.u32 %v1223, %v1224
        %v1226 = vmul.u32 %v1225, 2146121005
        %v1227 = vshrl.u32 %v1226, 15
        %v1228 = vxor.u32 %v1226, %v1227
        %v1229 = vmul.u32 %v1228, 2221713035
        %v1230 = vshrl.u32 %v1229, 16
        %v1231 = vxor.u32 %v1229, %v1230
        %v1232 = vshrl.u32 %v1231, 8
        %v1233 = vcvt.s32.f32 %v1232
        %v1234 = vmul.f32 %v1233, 5.9604645e-08
        %v1235 = vadd.f32 %v1234, 1e-10
        %v1236 = vlog2.pop %v1235
        %v1237 = vmul.f32 %v1236, 0.6931472
        %v1238 = vsub.f32 0.0, %v1237
        %v1239 = vadd.f32 %v1238, 1e-10
        %v1240 = vlog2.pop %v1239
        %v1241 = vmul.f32 %v1240, 0.6931472
        %v1242 = vsub.f32 0.0, %v1241
        %v1243 = vadd.f32 %v753, %v1242
        %v1244 = vmul.f32 %v1243, 1.442695
        %v1245 = vpow.pop %v1244
        %1246 = vmatprep.subr.mxu0 0.0
        %1247 = vmatpush1.msra.mxu0 1.0
        %1248 = vmatprep.subr.mxu0 0.0
        %1249 = vmatpush1.msra.mxu0 1.0
        %1250 = vmatprep.subr.mxu0 0.0
        %1251 = vmatpush1.msra.mxu0 1.0
        %1252 = vmatprep.subr.mxu0 0.0
        %1253 = vmatpush1.msra.mxu0 1.0
        %1254 = vmatprep.subr.mxu0 0.0
        %1255 = vmatpush1.msra.mxu0 1.0
        %1256 = vmatprep.subr.mxu0 0.0
        %1257 = vmatpush1.msra.mxu0 1.0
        %1258 = vmatprep.subr.mxu0 0.0
        %1259 = vmatpush1.msra.mxu0 1.0
        %1260 = vmatprep.subr.mxu0 0.0
        %1261 = vmatpush1.msra.mxu0 1.0
        %1262 = vmatprep.subr.mxu0 0.0
        %1263 = vmatpush1.msra.mxu0 1.0
        %1264 = vmatprep.subr.mxu0 0.0
        %1265 = vmatpush1.msra.mxu0 1.0
        %1266 = vmatprep.subr.mxu0 0.0
        %1267 = vmatpush1.msra.mxu0 1.0
        %1268 = vmatprep.subr.mxu0 0.0
        %1269 = vmatpush1.msra.mxu0 1.0
        %1270 = vmatprep.subr.mxu0 0.0
        %1271 = vmatpush1.msra.mxu0 1.0
        %1272 = vmatprep.subr.mxu0 0.0
        %1273 = vmatpush1.msra.mxu0 1.0
        %1274 = vmatprep.subr.mxu0 0.0
        %1275 = vmatpush1.msra.mxu0 1.0
        %1276 = vmatprep.subr.mxu0 0.0
        %1277 = vmatpush1.msra.mxu0 1.0
        %1278 = vmatprep.subr.mxu0 0.0
        %1279 = vmatpush1.msra.mxu0 0.0
        %1280 = vmatprep.subr.mxu0 0.0
        %1281 = vmatpush1.msra.mxu0 0.0
        %1282 = vmatprep.subr.mxu0 0.0
        %1283 = vmatpush1.msra.mxu0 0.0
        %1284 = vmatprep.subr.mxu0 0.0
        %1285 = vmatpush1.msra.mxu0 0.0
        %1286 = vmatprep.subr.mxu0 0.0
        %1287 = vmatpush1.msra.mxu0 0.0
        %1288 = vmatprep.subr.mxu0 0.0
        %1289 = vmatpush1.msra.mxu0 0.0
        %1290 = vmatprep.subr.mxu0 0.0
        %1291 = vmatpush1.msra.mxu0 0.0
        %1292 = vmatprep.subr.mxu0 0.0
        %1293 = vmatpush1.msra.mxu0 0.0
        %1294 = vmatprep.subr.mxu0 0.0
        %1295 = vmatpush1.msra.mxu0 0.0
        %1296 = vmatprep.subr.mxu0 0.0
        %1297 = vmatpush1.msra.mxu0 0.0
        %1298 = vmatprep.subr.mxu0 0.0
        %1299 = vmatpush1.msra.mxu0 0.0
        %1300 = vmatprep.subr.mxu0 0.0
        %1301 = vmatpush1.msra.mxu0 0.0
        %1302 = vmatprep.subr.mxu0 0.0
        %1303 = vmatpush1.msra.mxu0 0.0
        %1304 = vmatprep.subr.mxu0 0.0
        %1305 = vmatpush1.msra.mxu0 0.0
        %1306 = vmatprep.subr.mxu0 0.0
        %1307 = vmatpush1.msra.mxu0 0.0
        %1308 = vmatprep.subr.mxu0 0.0
        %1309 = vmatpush1.msra.mxu0 0.0
        %1310 = vmatprep.mubr.f32.mxu0 0.0
        %v1311 = vand.u32 %v1245, 4294901760
        %v1312 = vsub.f32 %v1245, %v1311
        %v1313 = vand.u32 %v1312, 4294901760
        %v1314 = vsub.f32 %v1312, %v1313
        %v1315 = vand.u32 %v1314, 4294901760
        %1316 = vmatmul.mubr.f32.gmra.mrb[0].mxu0 %v1315
        %v1317 = vpop.f32.mrb[0].mxu0
        %v1318 = vadd.f32 0.0, %v1317
        %v1319 = vpop.f32.mrb[0].mxu0
        %1320 = vdwg.mxu0
        %1321 = vmatprep.subr.mxu0 0.0
        %1322 = vmatpush1.msra.mxu0 0.0
        %1323 = vmatprep.subr.mxu0 0.0
        %1324 = vmatpush1.msra.mxu0 0.0
        %1325 = vmatprep.subr.mxu0 0.0
        %1326 = vmatpush1.msra.mxu0 0.0
        %1327 = vmatprep.subr.mxu0 0.0
        %1328 = vmatpush1.msra.mxu0 0.0
        %1329 = vmatprep.subr.mxu0 0.0
        %1330 = vmatpush1.msra.mxu0 0.0
        %1331 = vmatprep.subr.mxu0 0.0
        %1332 = vmatpush1.msra.mxu0 0.0
        %1333 = vmatprep.subr.mxu0 0.0
        %1334 = vmatpush1.msra.mxu0 0.0
        %1335 = vmatprep.subr.mxu0 0.0
        %1336 = vmatpush1.msra.mxu0 0.0
        %1337 = vmatprep.subr.mxu0 0.0
        %1338 = vmatpush1.msra.mxu0 0.0
        %1339 = vmatprep.subr.mxu0 0.0
        %1340 = vmatpush1.msra.mxu0 0.0
        %1341 = vmatprep.subr.mxu0 0.0
        %1342 = vmatpush1.msra.mxu0 0.0
        %1343 = vmatprep.subr.mxu0 0.0
        %1344 = vmatpush1.msra.mxu0 0.0
        %1345 = vmatprep.subr.mxu0 0.0
        %1346 = vmatpush1.msra.mxu0 0.0
        %1347 = vmatprep.subr.mxu0 0.0
        %1348 = vmatpush1.msra.mxu0 0.0
        %1349 = vmatprep.subr.mxu0 0.0
        %1350 = vmatpush1.msra.mxu0 0.0
        %1351 = vmatprep.subr.mxu0 0.0
        %1352 = vmatpush1.msra.mxu0 0.0
        %1353 = vmatprep.subr.mxu0 0.0
        %1354 = vmatpush1.msra.mxu0 0.0
        %1355 = vmatprep.subr.mxu0 0.0
        %1356 = vmatpush1.msra.mxu0 0.0
        %1357 = vmatprep.subr.mxu0 0.0
        %1358 = vmatpush1.msra.mxu0 0.0
        %1359 = vmatprep.subr.mxu0 0.0
        %1360 = vmatpush1.msra.mxu0 0.0
        %1361 = vmatprep.subr.mxu0 0.0
        %1362 = vmatpush1.msra.mxu0 0.0
        %1363 = vmatprep.subr.mxu0 0.0
        %1364 = vmatpush1.msra.mxu0 0.0
        %1365 = vmatprep.subr.mxu0 0.0
        %1366 = vmatpush1.msra.mxu0 0.0
        %1367 = vmatprep.subr.mxu0 0.0
        %1368 = vmatpush1.msra.mxu0 0.0
        %1369 = vmatprep.subr.mxu0 0.0
        %1370 = vmatpush1.msra.mxu0 0.0
        %1371 = vmatprep.subr.mxu0 0.0
        %1372 = vmatpush1.msra.mxu0 0.0
        %1373 = vmatprep.subr.mxu0 0.0
        %1374 = vmatpush1.msra.mxu0 0.0
        %1375 = vmatprep.subr.mxu0 0.0
        %1376 = vmatpush1.msra.mxu0 0.0
        %1377 = vmatprep.subr.mxu0 0.0
        %1378 = vmatpush1.msra.mxu0 0.0
        %1379 = vmatprep.subr.mxu0 0.0
        %1380 = vmatpush1.msra.mxu0 0.0
        %1381 = vmatprep.subr.mxu0 0.0
        %1382 = vmatpush1.msra.mxu0 0.0
        %1383 = vmatprep.subr.mxu0 0.0
        %1384 = vmatpush1.msra.mxu0 0.0
        %1385 = vmatprep.mubr.f32.mxu0 0.0
        %v1386 = vand.u32 %v1245, 4294901760
        %1387 = vmatmul.mubr.f32.gmra.mrb[0].mxu0 %v1386
        %v1388 = vpop.f32.mrb[0].mxu0
        %v1389 = vadd.f32 %v1318, %v1388
        %v1390 = vpop.f32.mrb[0].mxu0
        %1391 = vdwg.mxu0
        %1392 = vmatprep.subr.mxu0 0.0
        %1393 = vmatpush1.msra.mxu0 0.0
        %1394 = vmatprep.subr.mxu0 0.0
        %1395 = vmatpush1.msra.mxu0 0.0
        %1396 = vmatprep.subr.mxu0 0.0
        %1397 = vmatpush1.msra.mxu0 0.0
        %1398 = vmatprep.subr.mxu0 0.0
        %1399 = vmatpush1.msra.mxu0 0.0
        %1400 = vmatprep.subr.mxu0 0.0
        %1401 = vmatpush1.msra.mxu0 0.0
        %1402 = vmatprep.subr.mxu0 0.0
        %1403 = vmatpush1.msra.mxu0 0.0
        %1404 = vmatprep.subr.mxu0 0.0
        %1405 = vmatpush1.msra.mxu0 0.0
        %1406 = vmatprep.subr.mxu0 0.0
        %1407 = vmatpush1.msra.mxu0 0.0
        %1408 = vmatprep.subr.mxu0 0.0
        %1409 = vmatpush1.msra.mxu0 0.0
        %1410 = vmatprep.subr.mxu0 0.0
        %1411 = vmatpush1.msra.mxu0 0.0
        %1412 = vmatprep.subr.mxu0 0.0
        %1413 = vmatpush1.msra.mxu0 0.0
        %1414 = vmatprep.subr.mxu0 0.0
        %1415 = vmatpush1.msra.mxu0 0.0
        %1416 = vmatprep.subr.mxu0 0.0
        %1417 = vmatpush1.msra.mxu0 0.0
        %1418 = vmatprep.subr.mxu0 0.0
        %1419 = vmatpush1.msra.mxu0 0.0
        %1420 = vmatprep.subr.mxu0 0.0
        %1421 = vmatpush1.msra.mxu0 0.0
        %1422 = vmatprep.subr.mxu0 0.0
        %1423 = vmatpush1.msra.mxu0 0.0
        %1424 = vmatprep.subr.mxu0 0.0
        %1425 = vmatpush1.msra.mxu0 0.0
        %1426 = vmatprep.subr.mxu0 0.0
        %1427 = vmatpush1.msra.mxu0 0.0
        %1428 = vmatprep.subr.mxu0 0.0
        %1429 = vmatpush1.msra.mxu0 0.0
        %1430 = vmatprep.subr.mxu0 0.0
        %1431 = vmatpush1.msra.mxu0 0.0
        %1432 = vmatprep.subr.mxu0 0.0
        %1433 = vmatpush1.msra.mxu0 0.0
        %1434 = vmatprep.subr.mxu0 0.0
        %1435 = vmatpush1.msra.mxu0 0.0
        %1436 = vmatprep.subr.mxu0 0.0
        %1437 = vmatpush1.msra.mxu0 0.0
        %1438 = vmatprep.subr.mxu0 0.0
        %1439 = vmatpush1.msra.mxu0 0.0
        %1440 = vmatprep.subr.mxu0 0.0
        %1441 = vmatpush1.msra.mxu0 0.0
        %1442 = vmatprep.subr.mxu0 0.0
        %1443 = vmatpush1.msra.mxu0 0.0
        %1444 = vmatprep.subr.mxu0 0.0
        %1445 = vmatpush1.msra.mxu0 0.0
        %1446 = vmatprep.subr.mxu0 0.0
        %1447 = vmatpush1.msra.mxu0 0.0
        %1448 = vmatprep.subr.mxu0 0.0
        %1449 = vmatpush1.msra.mxu0 0.0
        %1450 = vmatprep.subr.mxu0 0.0
        %1451 = vmatpush1.msra.mxu0 0.0
        %1452 = vmatprep.subr.mxu0 0.0
        %1453 = vmatpush1.msra.mxu0 0.0
        %1454 = vmatprep.subr.mxu0 0.0
        %1455 = vmatpush1.msra.mxu0 0.0
        %1456 = vmatprep.mubr.f32.mxu0 0.0
        %v1457 = vand.u32 %v1245, 4294901760
        %v1458 = vsub.f32 %v1245, %v1457
        %1459 = vmatmul.mubr.f32.gmra.mrb[0].mxu0 %v1458
        %v1460 = vpop.f32.mrb[0].mxu0
        %v1461 = vadd.f32 %v1389, %v1460
        %v1462 = vpop.f32.mrb[0].mxu0
        %1463 = vdwg.mxu0
        %1464 = vmatprep.subr.mxu0 0.0
        %1465 = vmatpush1.msra.mxu0 1.0
        %1466 = vmatprep.subr.mxu0 0.0
        %1467 = vmatpush1.msra.mxu0 1.0
        %1468 = vmatprep.subr.mxu0 0.0
        %1469 = vmatpush1.msra.mxu0 1.0
        %1470 = vmatprep.subr.mxu0 0.0
        %1471 = vmatpush1.msra.mxu0 1.0
        %1472 = vmatprep.subr.mxu0 0.0
        %1473 = vmatpush1.msra.mxu0 1.0
        %1474 = vmatprep.subr.mxu0 0.0
        %1475 = vmatpush1.msra.mxu0 1.0
        %1476 = vmatprep.subr.mxu0 0.0
        %1477 = vmatpush1.msra.mxu0 1.0
        %1478 = vmatprep.subr.mxu0 0.0
        %1479 = vmatpush1.msra.mxu0 1.0
        %1480 = vmatprep.subr.mxu0 0.0
        %1481 = vmatpush1.msra.mxu0 1.0
        %1482 = vmatprep.subr.mxu0 0.0
        %1483 = vmatpush1.msra.mxu0 1.0
        %1484 = vmatprep.subr.mxu0 0.0
        %1485 = vmatpush1.msra.mxu0 1.0
        %1486 = vmatprep.subr.mxu0 0.0
        %1487 = vmatpush1.msra.mxu0 1.0
        %1488 = vmatprep.subr.mxu0 0.0
        %1489 = vmatpush1.msra.mxu0 1.0
        %1490 = vmatprep.subr.mxu0 0.0
        %1491 = vmatpush1.msra.mxu0 1.0
        %1492 = vmatprep.subr.mxu0 0.0
        %1493 = vmatpush1.msra.mxu0 1.0
        %1494 = vmatprep.subr.mxu0 0.0
        %1495 = vmatpush1.msra.mxu0 1.0
        %1496 = vmatprep.subr.mxu0 0.0
        %1497 = vmatpush1.msra.mxu0 0.0
        %1498 = vmatprep.subr.mxu0 0.0
        %1499 = vmatpush1.msra.mxu0 0.0
        %1500 = vmatprep.subr.mxu0 0.0
        %1501 = vmatpush1.msra.mxu0 0.0
        %1502 = vmatprep.subr.mxu0 0.0
        %1503 = vmatpush1.msra.mxu0 0.0
        %1504 = vmatprep.subr.mxu0 0.0
        %1505 = vmatpush1.msra.mxu0 0.0
        %1506 = vmatprep.subr.mxu0 0.0
        %1507 = vmatpush1.msra.mxu0 0.0
        %1508 = vmatprep.subr.mxu0 0.0
        %1509 = vmatpush1.msra.mxu0 0.0
        %1510 = vmatprep.subr.mxu0 0.0
        %1511 = vmatpush1.msra.mxu0 0.0
        %1512 = vmatprep.subr.mxu0 0.0
        %1513 = vmatpush1.msra.mxu0 0.0
        %1514 = vmatprep.subr.mxu0 0.0
        %1515 = vmatpush1.msra.mxu0 0.0
        %1516 = vmatprep.subr.mxu0 0.0
        %1517 = vmatpush1.msra.mxu0 0.0
        %1518 = vmatprep.subr.mxu0 0.0
        %1519 = vmatpush1.msra.mxu0 0.0
        %1520 = vmatprep.subr.mxu0 0.0
        %1521 = vmatpush1.msra.mxu0 0.0
        %1522 = vmatprep.subr.mxu0 0.0
        %1523 = vmatpush1.msra.mxu0 0.0
        %1524 = vmatprep.subr.mxu0 0.0
        %1525 = vmatpush1.msra.mxu0 0.0
        %1526 = vmatprep.subr.mxu0 0.0
        %1527 = vmatpush1.msra.mxu0 0.0
        %1528 = vmatprep.mubr.f32.mxu0 0.0
        %v1529 = vand.u32 %v1245, 4294901760
        %v1530 = vsub.f32 %v1245, %v1529
        %v1531 = vand.u32 %v1530, 4294901760
        %1532 = vmatmul.mubr.f32.gmra.mrb[0].mxu0 %v1531
        %v1533 = vpop.f32.mrb[0].mxu0
        %v1534 = vadd.f32 %v1461, %v1533
        %v1535 = vpop.f32.mrb[0].mxu0
        %1536 = vdwg.mxu0
        %1537 = vmatprep.subr.mxu0 0.0
        %1538 = vmatpush1.msra.mxu0 0.0
        %1539 = vmatprep.subr.mxu0 0.0
        %1540 = vmatpush1.msra.mxu0 0.0
        %1541 = vmatprep.subr.mxu0 0.0
        %1542 = vmatpush1.msra.mxu0 0.0
        %1543 = vmatprep.subr.mxu0 0.0
        %1544 = vmatpush1.msra.mxu0 0.0
        %1545 = vmatprep.subr.mxu0 0.0
        %1546 = vmatpush1.msra.mxu0 0.0
        %1547 = vmatprep.subr.mxu0 0.0
        %1548 = vmatpush1.msra.mxu0 0.0
        %1549 = vmatprep.subr.mxu0 0.0
        %1550 = vmatpush1.msra.mxu0 0.0
        %1551 = vmatprep.subr.mxu0 0.0
        %1552 = vmatpush1.msra.mxu0 0.0
        %1553 = vmatprep.subr.mxu0 0.0
        %1554 = vmatpush1.msra.mxu0 0.0
        %1555 = vmatprep.subr.mxu0 0.0
        %1556 = vmatpush1.msra.mxu0 0.0
        %1557 = vmatprep.subr.mxu0 0.0
        %1558 = vmatpush1.msra.mxu0 0.0
        %1559 = vmatprep.subr.mxu0 0.0
        %1560 = vmatpush1.msra.mxu0 0.0
        %1561 = vmatprep.subr.mxu0 0.0
        %1562 = vmatpush1.msra.mxu0 0.0
        %1563 = vmatprep.subr.mxu0 0.0
        %1564 = vmatpush1.msra.mxu0 0.0
        %1565 = vmatprep.subr.mxu0 0.0
        %1566 = vmatpush1.msra.mxu0 0.0
        %1567 = vmatprep.subr.mxu0 0.0
        %1568 = vmatpush1.msra.mxu0 0.0
        %1569 = vmatprep.subr.mxu0 0.0
        %1570 = vmatpush1.msra.mxu0 0.0
        %1571 = vmatprep.subr.mxu0 0.0
        %1572 = vmatpush1.msra.mxu0 0.0
        %1573 = vmatprep.subr.mxu0 0.0
        %1574 = vmatpush1.msra.mxu0 0.0
        %1575 = vmatprep.subr.mxu0 0.0
        %1576 = vmatpush1.msra.mxu0 0.0
        %1577 = vmatprep.subr.mxu0 0.0
        %1578 = vmatpush1.msra.mxu0 0.0
        %1579 = vmatprep.subr.mxu0 0.0
        %1580 = vmatpush1.msra.mxu0 0.0
        %1581 = vmatprep.subr.mxu0 0.0
        %1582 = vmatpush1.msra.mxu0 0.0
        %1583 = vmatprep.subr.mxu0 0.0
        %1584 = vmatpush1.msra.mxu0 0.0
        %1585 = vmatprep.subr.mxu0 0.0
        %1586 = vmatpush1.msra.mxu0 0.0
        %1587 = vmatprep.subr.mxu0 0.0
        %1588 = vmatpush1.msra.mxu0 0.0
        %1589 = vmatprep.subr.mxu0 0.0
        %1590 = vmatpush1.msra.mxu0 0.0
        %1591 = vmatprep.subr.mxu0 0.0
        %1592 = vmatpush1.msra.mxu0 0.0
        %1593 = vmatprep.subr.mxu0 0.0
        %1594 = vmatpush1.msra.mxu0 0.0
        %1595 = vmatprep.subr.mxu0 0.0
        %1596 = vmatpush1.msra.mxu0 0.0
        %1597 = vmatprep.subr.mxu0 0.0
        %1598 = vmatpush1.msra.mxu0 0.0
        %1599 = vmatprep.subr.mxu0 0.0
        %1600 = vmatpush1.msra.mxu0 0.0
        %1601 = vmatprep.mubr.f32.mxu0 0.0
        %v1602 = vand.u32 %v1245, 4294901760
        %1603 = vmatmul.mubr.f32.gmra.mrb[0].mxu0 %v1602
        %v1604 = vpop.f32.mrb[0].mxu0
        %v1605 = vadd.f32 %v1534, %v1604
        %v1606 = vpop.f32.mrb[0].mxu0
        %1607 = vdwg.mxu0
        %1608 = vmatprep.subr.mxu0 0.0
        %1609 = vmatpush1.msra.mxu0 1.0
        %1610 = vmatprep.subr.mxu0 0.0
        %1611 = vmatpush1.msra.mxu0 1.0
        %1612 = vmatprep.subr.mxu0 0.0
        %1613 = vmatpush1.msra.mxu0 1.0
        %1614 = vmatprep.subr.mxu0 0.0
        %1615 = vmatpush1.msra.mxu0 1.0
        %1616 = vmatprep.subr.mxu0 0.0
        %1617 = vmatpush1.msra.mxu0 1.0
        %1618 = vmatprep.subr.mxu0 0.0
        %1619 = vmatpush1.msra.mxu0 1.0
        %1620 = vmatprep.subr.mxu0 0.0
        %1621 = vmatpush1.msra.mxu0 1.0
        %1622 = vmatprep.subr.mxu0 0.0
        %1623 = vmatpush1.msra.mxu0 1.0
        %1624 = vmatprep.subr.mxu0 0.0
        %1625 = vmatpush1.msra.mxu0 1.0
        %1626 = vmatprep.subr.mxu0 0.0
        %1627 = vmatpush1.msra.mxu0 1.0
        %1628 = vmatprep.subr.mxu0 0.0
        %1629 = vmatpush1.msra.mxu0 1.0
        %1630 = vmatprep.subr.mxu0 0.0
        %1631 = vmatpush1.msra.mxu0 1.0
        %1632 = vmatprep.subr.mxu0 0.0
        %1633 = vmatpush1.msra.mxu0 1.0
        %1634 = vmatprep.subr.mxu0 0.0
        %1635 = vmatpush1.msra.mxu0 1.0
        %1636 = vmatprep.subr.mxu0 0.0
        %1637 = vmatpush1.msra.mxu0 1.0
        %1638 = vmatprep.subr.mxu0 0.0
        %1639 = vmatpush1.msra.mxu0 1.0
        %1640 = vmatprep.subr.mxu0 0.0
        %1641 = vmatpush1.msra.mxu0 0.0
        %1642 = vmatprep.subr.mxu0 0.0
        %1643 = vmatpush1.msra.mxu0 0.0
        %1644 = vmatprep.subr.mxu0 0.0
        %1645 = vmatpush1.msra.mxu0 0.0
        %1646 = vmatprep.subr.mxu0 0.0
        %1647 = vmatpush1.msra.mxu0 0.0
        %1648 = vmatprep.subr.mxu0 0.0
        %1649 = vmatpush1.msra.mxu0 0.0
        %1650 = vmatprep.subr.mxu0 0.0
        %1651 = vmatpush1.msra.mxu0 0.0
        %1652 = vmatprep.subr.mxu0 0.0
        %1653 = vmatpush1.msra.mxu0 0.0
        %1654 = vmatprep.subr.mxu0 0.0
        %1655 = vmatpush1.msra.mxu0 0.0
        %1656 = vmatprep.subr.mxu0 0.0
        %1657 = vmatpush1.msra.mxu0 0.0
        %1658 = vmatprep.subr.mxu0 0.0
        %1659 = vmatpush1.msra.mxu0 0.0
        %1660 = vmatprep.subr.mxu0 0.0
        %1661 = vmatpush1.msra.mxu0 0.0
        %1662 = vmatprep.subr.mxu0 0.0
        %1663 = vmatpush1.msra.mxu0 0.0
        %1664 = vmatprep.subr.mxu0 0.0
        %1665 = vmatpush1.msra.mxu0 0.0
        %1666 = vmatprep.subr.mxu0 0.0
        %1667 = vmatpush1.msra.mxu0 0.0
        %1668 = vmatprep.subr.mxu0 0.0
        %1669 = vmatpush1.msra.mxu0 0.0
        %1670 = vmatprep.subr.mxu0 0.0
        %1671 = vmatpush1.msra.mxu0 0.0
        %1672 = vmatprep.mubr.f32.mxu0 0.0
        %v1673 = vand.u32 %v1245, 4294901760
        %1674 = vmatmul.mubr.f32.gmra.mrb[0].mxu0 %v1673
        %v1675 = vpop.f32.mrb[0].mxu0
        %v1676 = vadd.f32 %v1605, %v1675
        %v1677 = vpop.f32.mrb[0].mxu0
        %1678 = vdwg.mxu0
        %v1679 = vrcp.pop %v1676
        %v1680 = vmul.f32 1.0, %v1679
        %1682 = vset.pattern.permute.xlu0 0
        %1683 = vperm.xlu0 %1682, %v1680
        %v1684 = vpop.permute.xlu0 %1683
        %v1686 = vmul.f32 %v1245, %v1684
        %v1687 = vxor.u32 %v251, 387276957
        %v1688 = vadd.s32 %v1687, %v255
        %v1689 = vshrl.u32 %v1688, 16
        %v1690 = vxor.u32 %v1688, %v1689
        %v1691 = vmul.u32 %v1690, 2146121005
        %v1692 = vshrl.u32 %v1691, 15
        %v1693 = vxor.u32 %v1691, %v1692
        %v1694 = vmul.u32 %v1693, 2221713035
        %v1695 = vshrl.u32 %v1694, 16
        %v1696 = vxor.u32 %v1694, %v1695
        %v1697 = vshrl.u32 %v1696, 8
        %v1698 = vcvt.s32.f32 %v1697
        %v1699 = vmul.f32 %v1698, 5.9604645e-08
        %v1700 = vadd.f32 %v1699, 1e-10
        %v1701 = vlog2.pop %v1700
        %v1702 = vmul.f32 %v1701, 0.6931472
        %v1703 = vsub.f32 0.0, %v1702
        %v1704 = vadd.f32 %v1703, 1e-10
        %v1705 = vlog2.pop %v1704
        %v1706 = vmul.f32 %v1705, 0.6931472
        %v1707 = vsub.f32 0.0, %v1706
        %v1708 = vadd.f32 %v1221, %v1707
        %v1709 = vmul.f32 %v1708, 1.442695
        %v1710 = vpow.pop %v1709
        %1711 = vmatprep.subr.mxu0 0.0
        %1712 = vmatpush1.msra.mxu0 1.0
        %1713 = vmatprep.subr.mxu0 0.0
        %1714 = vmatpush1.msra.mxu0 1.0
        %1715 = vmatprep.subr.mxu0 0.0
        %1716 = vmatpush1.msra.mxu0 1.0
        %1717 = vmatprep.subr.mxu0 0.0
        %1718 = vmatpush1.msra.mxu0 1.0
        %1719 = vmatprep.subr.mxu0 0.0
        %1720 = vmatpush1.msra.mxu0 1.0
        %1721 = vmatprep.subr.mxu0 0.0
        %1722 = vmatpush1.msra.mxu0 1.0
        %1723 = vmatprep.subr.mxu0 0.0
        %1724 = vmatpush1.msra.mxu0 1.0
        %1725 = vmatprep.subr.mxu0 0.0
        %1726 = vmatpush1.msra.mxu0 1.0
        %1727 = vmatprep.subr.mxu0 0.0
        %1728 = vmatpush1.msra.mxu0 1.0
        %1729 = vmatprep.subr.mxu0 0.0
        %1730 = vmatpush1.msra.mxu0 1.0
        %1731 = vmatprep.subr.mxu0 0.0
        %1732 = vmatpush1.msra.mxu0 1.0
        %1733 = vmatprep.subr.mxu0 0.0
        %1734 = vmatpush1.msra.mxu0 1.0
        %1735 = vmatprep.subr.mxu0 0.0
        %1736 = vmatpush1.msra.mxu0 1.0
        %1737 = vmatprep.subr.mxu0 0.0
        %1738 = vmatpush1.msra.mxu0 1.0
        %1739 = vmatprep.subr.mxu0 0.0
        %1740 = vmatpush1.msra.mxu0 1.0
        %1741 = vmatprep.subr.mxu0 0.0
        %1742 = vmatpush1.msra.mxu0 1.0
        %1743 = vmatprep.subr.mxu0 0.0
        %1744 = vmatpush1.msra.mxu0 0.0
        %1745 = vmatprep.subr.mxu0 0.0
        %1746 = vmatpush1.msra.mxu0 0.0
        %1747 = vmatprep.subr.mxu0 0.0
        %1748 = vmatpush1.msra.mxu0 0.0
        %1749 = vmatprep.subr.mxu0 0.0
        %1750 = vmatpush1.msra.mxu0 0.0
        %1751 = vmatprep.subr.mxu0 0.0
        %1752 = vmatpush1.msra.mxu0 0.0
        %1753 = vmatprep.subr.mxu0 0.0
        %1754 = vmatpush1.msra.mxu0 0.0
        %1755 = vmatprep.subr.mxu0 0.0
        %1756 = vmatpush1.msra.mxu0 0.0
        %1757 = vmatprep.subr.mxu0 0.0
        %1758 = vmatpush1.msra.mxu0 0.0
        %1759 = vmatprep.subr.mxu0 0.0
        %1760 = vmatpush1.msra.mxu0 0.0
        %1761 = vmatprep.subr.mxu0 0.0
        %1762 = vmatpush1.msra.mxu0 0.0
        %1763 = vmatprep.subr.mxu0 0.0
        %1764 = vmatpush1.msra.mxu0 0.0
        %1765 = vmatprep.subr.mxu0 0.0
        %1766 = vmatpush1.msra.mxu0 0.0
        %1767 = vmatprep.subr.mxu0 0.0
        %1768 = vmatpush1.msra.mxu0 0.0
        %1769 = vmatprep.subr.mxu0 0.0
        %1770 = vmatpush1.msra.mxu0 0.0
        %1771 = vmatprep.subr.mxu0 0.0
        %1772 = vmatpush1.msra.mxu0 0.0
        %1773 = vmatprep.subr.mxu0 0.0
        %1774 = vmatpush1.msra.mxu0 0.0
        %1775 = vmatprep.mubr.f32.mxu0 0.0
        %v1776 = vand.u32 %v1710, 4294901760
        %v1777 = vsub.f32 %v1710, %v1776
        %v1778 = vand.u32 %v1777, 4294901760
        %v1779 = vsub.f32 %v1777, %v1778
        %v1780 = vand.u32 %v1779, 4294901760
        %1781 = vmatmul.mubr.f32.gmra.mrb[0].mxu0 %v1780
        %v1782 = vpop.f32.mrb[0].mxu0
        %v1783 = vadd.f32 0.0, %v1782
        %v1784 = vpop.f32.mrb[0].mxu0
        %1785 = vdwg.mxu0
        %1786 = vmatprep.subr.mxu0 0.0
        %1787 = vmatpush1.msra.mxu0 0.0
        %1788 = vmatprep.subr.mxu0 0.0
        %1789 = vmatpush1.msra.mxu0 0.0
        %1790 = vmatprep.subr.mxu0 0.0
        %1791 = vmatpush1.msra.mxu0 0.0
        %1792 = vmatprep.subr.mxu0 0.0
        %1793 = vmatpush1.msra.mxu0 0.0
        %1794 = vmatprep.subr.mxu0 0.0
        %1795 = vmatpush1.msra.mxu0 0.0
        %1796 = vmatprep.subr.mxu0 0.0
        %1797 = vmatpush1.msra.mxu0 0.0
        %1798 = vmatprep.subr.mxu0 0.0
        %1799 = vmatpush1.msra.mxu0 0.0
        %1800 = vmatprep.subr.mxu0 0.0
        %1801 = vmatpush1.msra.mxu0 0.0
        %1802 = vmatprep.subr.mxu0 0.0
        %1803 = vmatpush1.msra.mxu0 0.0
        %1804 = vmatprep.subr.mxu0 0.0
        %1805 = vmatpush1.msra.mxu0 0.0
        %1806 = vmatprep.subr.mxu0 0.0
        %1807 = vmatpush1.msra.mxu0 0.0
        %1808 = vmatprep.subr.mxu0 0.0
        %1809 = vmatpush1.msra.mxu0 0.0
        %1810 = vmatprep.subr.mxu0 0.0
        %1811 = vmatpush1.msra.mxu0 0.0
        %1812 = vmatprep.subr.mxu0 0.0
        %1813 = vmatpush1.msra.mxu0 0.0
        %1814 = vmatprep.subr.mxu0 0.0
        %1815 = vmatpush1.msra.mxu0 0.0
        %1816 = vmatprep.subr.mxu0 0.0
        %1817 = vmatpush1.msra.mxu0 0.0
        %1818 = vmatprep.subr.mxu0 0.0
        %1819 = vmatpush1.msra.mxu0 0.0
        %1820 = vmatprep.subr.mxu0 0.0
        %1821 = vmatpush1.msra.mxu0 0.0
        %1822 = vmatprep.subr.mxu0 0.0
        %1823 = vmatpush1.msra.mxu0 0.0
        %1824 = vmatprep.subr.mxu0 0.0
        %1825 = vmatpush1.msra.mxu0 0.0
        %1826 = vmatprep.subr.mxu0 0.0
        %1827 = vmatpush1.msra.mxu0 0.0
        %1828 = vmatprep.subr.mxu0 0.0
        %1829 = vmatpush1.msra.mxu0 0.0
        %1830 = vmatprep.subr.mxu0 0.0
        %1831 = vmatpush1.msra.mxu0 0.0
        %1832 = vmatprep.subr.mxu0 0.0
        %1833 = vmatpush1.msra.mxu0 0.0
        %1834 = vmatprep.subr.mxu0 0.0
        %1835 = vmatpush1.msra.mxu0 0.0
        %1836 = vmatprep.subr.mxu0 0.0
        %1837 = vmatpush1.msra.mxu0 0.0
        %1838 = vmatprep.subr.mxu0 0.0
        %1839 = vmatpush1.msra.mxu0 0.0
        %1840 = vmatprep.subr.mxu0 0.0
        %1841 = vmatpush1.msra.mxu0 0.0
        %1842 = vmatprep.subr.mxu0 0.0
        %1843 = vmatpush1.msra.mxu0 0.0
        %1844 = vmatprep.subr.mxu0 0.0
        %1845 = vmatpush1.msra.mxu0 0.0
        %1846 = vmatprep.subr.mxu0 0.0
        %1847 = vmatpush1.msra.mxu0 0.0
        %1848 = vmatprep.subr.mxu0 0.0
        %1849 = vmatpush1.msra.mxu0 0.0
        %1850 = vmatprep.mubr.f32.mxu0 0.0
        %v1851 = vand.u32 %v1710, 4294901760
        %1852 = vmatmul.mubr.f32.gmra.mrb[0].mxu0 %v1851
        %v1853 = vpop.f32.mrb[0].mxu0
        %v1854 = vadd.f32 %v1783, %v1853
        %v1855 = vpop.f32.mrb[0].mxu0
        %1856 = vdwg.mxu0
        %1857 = vmatprep.subr.mxu0 0.0
        %1858 = vmatpush1.msra.mxu0 0.0
        %1859 = vmatprep.subr.mxu0 0.0
        %1860 = vmatpush1.msra.mxu0 0.0
        %1861 = vmatprep.subr.mxu0 0.0
        %1862 = vmatpush1.msra.mxu0 0.0
        %1863 = vmatprep.subr.mxu0 0.0
        %1864 = vmatpush1.msra.mxu0 0.0
        %1865 = vmatprep.subr.mxu0 0.0
        %1866 = vmatpush1.msra.mxu0 0.0
        %1867 = vmatprep.subr.mxu0 0.0
        %1868 = vmatpush1.msra.mxu0 0.0
        %1869 = vmatprep.subr.mxu0 0.0
        %1870 = vmatpush1.msra.mxu0 0.0
        %1871 = vmatprep.subr.mxu0 0.0
        %1872 = vmatpush1.msra.mxu0 0.0
        %1873 = vmatprep.subr.mxu0 0.0
        %1874 = vmatpush1.msra.mxu0 0.0
        %1875 = vmatprep.subr.mxu0 0.0
        %1876 = vmatpush1.msra.mxu0 0.0
        %1877 = vmatprep.subr.mxu0 0.0
        %1878 = vmatpush1.msra.mxu0 0.0
        %1879 = vmatprep.subr.mxu0 0.0
        %1880 = vmatpush1.msra.mxu0 0.0
        %1881 = vmatprep.subr.mxu0 0.0
        %1882 = vmatpush1.msra.mxu0 0.0
        %1883 = vmatprep.subr.mxu0 0.0
        %1884 = vmatpush1.msra.mxu0 0.0
        %1885 = vmatprep.subr.mxu0 0.0
        %1886 = vmatpush1.msra.mxu0 0.0
        %1887 = vmatprep.subr.mxu0 0.0
        %1888 = vmatpush1.msra.mxu0 0.0
        %1889 = vmatprep.subr.mxu0 0.0
        %1890 = vmatpush1.msra.mxu0 0.0
        %1891 = vmatprep.subr.mxu0 0.0
        %1892 = vmatpush1.msra.mxu0 0.0
        %1893 = vmatprep.subr.mxu0 0.0
        %1894 = vmatpush1.msra.mxu0 0.0
        %1895 = vmatprep.subr.mxu0 0.0
        %1896 = vmatpush1.msra.mxu0 0.0
        %1897 = vmatprep.subr.mxu0 0.0
        %1898 = vmatpush1.msra.mxu0 0.0
        %1899 = vmatprep.subr.mxu0 0.0
        %1900 = vmatpush1.msra.mxu0 0.0
        %1901 = vmatprep.subr.mxu0 0.0
        %1902 = vmatpush1.msra.mxu0 0.0
        %1903 = vmatprep.subr.mxu0 0.0
        %1904 = vmatpush1.msra.mxu0 0.0
        %1905 = vmatprep.subr.mxu0 0.0
        %1906 = vmatpush1.msra.mxu0 0.0
        %1907 = vmatprep.subr.mxu0 0.0
        %1908 = vmatpush1.msra.mxu0 0.0
        %1909 = vmatprep.subr.mxu0 0.0
        %1910 = vmatpush1.msra.mxu0 0.0
        %1911 = vmatprep.subr.mxu0 0.0
        %1912 = vmatpush1.msra.mxu0 0.0
        %1913 = vmatprep.subr.mxu0 0.0
        %1914 = vmatpush1.msra.mxu0 0.0
        %1915 = vmatprep.subr.mxu0 0.0
        %1916 = vmatpush1.msra.mxu0 0.0
        %1917 = vmatprep.subr.mxu0 0.0
        %1918 = vmatpush1.msra.mxu0 0.0
        %1919 = vmatprep.subr.mxu0 0.0
        %1920 = vmatpush1.msra.mxu0 0.0
        %1921 = vmatprep.mubr.f32.mxu0 0.0
        %v1922 = vand.u32 %v1710, 4294901760
        %v1923 = vsub.f32 %v1710, %v1922
        %1924 = vmatmul.mubr.f32.gmra.mrb[0].mxu0 %v1923
        %v1925 = vpop.f32.mrb[0].mxu0
        %v1926 = vadd.f32 %v1854, %v1925
        %v1927 = vpop.f32.mrb[0].mxu0
        %1928 = vdwg.mxu0
        %1929 = vmatprep.subr.mxu0 0.0
        %1930 = vmatpush1.msra.mxu0 1.0
        %1931 = vmatprep.subr.mxu0 0.0
        %1932 = vmatpush1.msra.mxu0 1.0
        %1933 = vmatprep.subr.mxu0 0.0
        %1934 = vmatpush1.msra.mxu0 1.0
        %1935 = vmatprep.subr.mxu0 0.0
        %1936 = vmatpush1.msra.mxu0 1.0
        %1937 = vmatprep.subr.mxu0 0.0
        %1938 = vmatpush1.msra.mxu0 1.0
        %1939 = vmatprep.subr.mxu0 0.0
        %1940 = vmatpush1.msra.mxu0 1.0
        %1941 = vmatprep.subr.mxu0 0.0
        %1942 = vmatpush1.msra.mxu0 1.0
        %1943 = vmatprep.subr.mxu0 0.0
        %1944 = vmatpush1.msra.mxu0 1.0
        %1945 = vmatprep.subr.mxu0 0.0
        %1946 = vmatpush1.msra.mxu0 1.0
        %1947 = vmatprep.subr.mxu0 0.0
        %1948 = vmatpush1.msra.mxu0 1.0
        %1949 = vmatprep.subr.mxu0 0.0
        %1950 = vmatpush1.msra.mxu0 1.0
        %1951 = vmatprep.subr.mxu0 0.0
        %1952 = vmatpush1.msra.mxu0 1.0
        %1953 = vmatprep.subr.mxu0 0.0
        %1954 = vmatpush1.msra.mxu0 1.0
        %1955 = vmatprep.subr.mxu0 0.0
        %1956 = vmatpush1.msra.mxu0 1.0
        %1957 = vmatprep.subr.mxu0 0.0
        %1958 = vmatpush1.msra.mxu0 1.0
        %1959 = vmatprep.subr.mxu0 0.0
        %1960 = vmatpush1.msra.mxu0 1.0
        %1961 = vmatprep.subr.mxu0 0.0
        %1962 = vmatpush1.msra.mxu0 0.0
        %1963 = vmatprep.subr.mxu0 0.0
        %1964 = vmatpush1.msra.mxu0 0.0
        %1965 = vmatprep.subr.mxu0 0.0
        %1966 = vmatpush1.msra.mxu0 0.0
        %1967 = vmatprep.subr.mxu0 0.0
        %1968 = vmatpush1.msra.mxu0 0.0
        %1969 = vmatprep.subr.mxu0 0.0
        %1970 = vmatpush1.msra.mxu0 0.0
        %1971 = vmatprep.subr.mxu0 0.0
        %1972 = vmatpush1.msra.mxu0 0.0
        %1973 = vmatprep.subr.mxu0 0.0
        %1974 = vmatpush1.msra.mxu0 0.0
        %1975 = vmatprep.subr.mxu0 0.0
        %1976 = vmatpush1.msra.mxu0 0.0
        %1977 = vmatprep.subr.mxu0 0.0
        %1978 = vmatpush1.msra.mxu0 0.0
        %1979 = vmatprep.subr.mxu0 0.0
        %1980 = vmatpush1.msra.mxu0 0.0
        %1981 = vmatprep.subr.mxu0 0.0
        %1982 = vmatpush1.msra.mxu0 0.0
        %1983 = vmatprep.subr.mxu0 0.0
        %1984 = vmatpush1.msra.mxu0 0.0
        %1985 = vmatprep.subr.mxu0 0.0
        %1986 = vmatpush1.msra.mxu0 0.0
        %1987 = vmatprep.subr.mxu0 0.0
        %1988 = vmatpush1.msra.mxu0 0.0
        %1989 = vmatprep.subr.mxu0 0.0
        %1990 = vmatpush1.msra.mxu0 0.0
        %1991 = vmatprep.subr.mxu0 0.0
        %1992 = vmatpush1.msra.mxu0 0.0
        %1993 = vmatprep.mubr.f32.mxu0 0.0
        %v1994 = vand.u32 %v1710, 4294901760
        %v1995 = vsub.f32 %v1710, %v1994
        %v1996 = vand.u32 %v1995, 4294901760
        %1997 = vmatmul.mubr.f32.gmra.mrb[0].mxu0 %v1996
        %v1998 = vpop.f32.mrb[0].mxu0
        %v1999 = vadd.f32 %v1926, %v1998
        %v2000 = vpop.f32.mrb[0].mxu0
        %2001 = vdwg.mxu0
        %2002 = vmatprep.subr.mxu0 0.0
        %2003 = vmatpush1.msra.mxu0 0.0
        %2004 = vmatprep.subr.mxu0 0.0
        %2005 = vmatpush1.msra.mxu0 0.0
        %2006 = vmatprep.subr.mxu0 0.0
        %2007 = vmatpush1.msra.mxu0 0.0
        %2008 = vmatprep.subr.mxu0 0.0
        %2009 = vmatpush1.msra.mxu0 0.0
        %2010 = vmatprep.subr.mxu0 0.0
        %2011 = vmatpush1.msra.mxu0 0.0
        %2012 = vmatprep.subr.mxu0 0.0
        %2013 = vmatpush1.msra.mxu0 0.0
        %2014 = vmatprep.subr.mxu0 0.0
        %2015 = vmatpush1.msra.mxu0 0.0
        %2016 = vmatprep.subr.mxu0 0.0
        %2017 = vmatpush1.msra.mxu0 0.0
        %2018 = vmatprep.subr.mxu0 0.0
        %2019 = vmatpush1.msra.mxu0 0.0
        %2020 = vmatprep.subr.mxu0 0.0
        %2021 = vmatpush1.msra.mxu0 0.0
        %2022 = vmatprep.subr.mxu0 0.0
        %2023 = vmatpush1.msra.mxu0 0.0
        %2024 = vmatprep.subr.mxu0 0.0
        %2025 = vmatpush1.msra.mxu0 0.0
        %2026 = vmatprep.subr.mxu0 0.0
        %2027 = vmatpush1.msra.mxu0 0.0
        %2028 = vmatprep.subr.mxu0 0.0
        %2029 = vmatpush1.msra.mxu0 0.0
        %2030 = vmatprep.subr.mxu0 0.0
        %2031 = vmatpush1.msra.mxu0 0.0
        %2032 = vmatprep.subr.mxu0 0.0
        %2033 = vmatpush1.msra.mxu0 0.0
        %2034 = vmatprep.subr.mxu0 0.0
        %2035 = vmatpush1.msra.mxu0 0.0
        %2036 = vmatprep.subr.mxu0 0.0
        %2037 = vmatpush1.msra.mxu0 0.0
        %2038 = vmatprep.subr.mxu0 0.0
        %2039 = vmatpush1.msra.mxu0 0.0
        %2040 = vmatprep.subr.mxu0 0.0
        %2041 = vmatpush1.msra.mxu0 0.0
        %2042 = vmatprep.subr.mxu0 0.0
        %2043 = vmatpush1.msra.mxu0 0.0
        %2044 = vmatprep.subr.mxu0 0.0
        %2045 = vmatpush1.msra.mxu0 0.0
        %2046 = vmatprep.subr.mxu0 0.0
        %2047 = vmatpush1.msra.mxu0 0.0
        %2048 = vmatprep.subr.mxu0 0.0
        %2049 = vmatpush1.msra.mxu0 0.0
        %2050 = vmatprep.subr.mxu0 0.0
        %2051 = vmatpush1.msra.mxu0 0.0
        %2052 = vmatprep.subr.mxu0 0.0
        %2053 = vmatpush1.msra.mxu0 0.0
        %2054 = vmatprep.subr.mxu0 0.0
        %2055 = vmatpush1.msra.mxu0 0.0
        %2056 = vmatprep.subr.mxu0 0.0
        %2057 = vmatpush1.msra.mxu0 0.0
        %2058 = vmatprep.subr.mxu0 0.0
        %2059 = vmatpush1.msra.mxu0 0.0
        %2060 = vmatprep.subr.mxu0 0.0
        %2061 = vmatpush1.msra.mxu0 0.0
        %2062 = vmatprep.subr.mxu0 0.0
        %2063 = vmatpush1.msra.mxu0 0.0
        %2064 = vmatprep.subr.mxu0 0.0
        %2065 = vmatpush1.msra.mxu0 0.0
        %2066 = vmatprep.mubr.f32.mxu0 0.0
        %v2067 = vand.u32 %v1710, 4294901760
        %2068 = vmatmul.mubr.f32.gmra.mrb[0].mxu0 %v2067
        %v2069 = vpop.f32.mrb[0].mxu0
        %v2070 = vadd.f32 %v1999, %v2069
        %v2071 = vpop.f32.mrb[0].mxu0
        %2072 = vdwg.mxu0
        %2073 = vmatprep.subr.mxu0 0.0
        %2074 = vmatpush1.msra.mxu0 1.0
        %2075 = vmatprep.subr.mxu0 0.0
        %2076 = vmatpush1.msra.mxu0 1.0
        %2077 = vmatprep.subr.mxu0 0.0
        %2078 = vmatpush1.msra.mxu0 1.0
        %2079 = vmatprep.subr.mxu0 0.0
        %2080 = vmatpush1.msra.mxu0 1.0
        %2081 = vmatprep.subr.mxu0 0.0
        %2082 = vmatpush1.msra.mxu0 1.0
        %2083 = vmatprep.subr.mxu0 0.0
        %2084 = vmatpush1.msra.mxu0 1.0
        %2085 = vmatprep.subr.mxu0 0.0
        %2086 = vmatpush1.msra.mxu0 1.0
        %2087 = vmatprep.subr.mxu0 0.0
        %2088 = vmatpush1.msra.mxu0 1.0
        %2089 = vmatprep.subr.mxu0 0.0
        %2090 = vmatpush1.msra.mxu0 1.0
        %2091 = vmatprep.subr.mxu0 0.0
        %2092 = vmatpush1.msra.mxu0 1.0
        %2093 = vmatprep.subr.mxu0 0.0
        %2094 = vmatpush1.msra.mxu0 1.0
        %2095 = vmatprep.subr.mxu0 0.0
        %2096 = vmatpush1.msra.mxu0 1.0
        %2097 = vmatprep.subr.mxu0 0.0
        %2098 = vmatpush1.msra.mxu0 1.0
        %2099 = vmatprep.subr.mxu0 0.0
        %2100 = vmatpush1.msra.mxu0 1.0
        %2101 = vmatprep.subr.mxu0 0.0
        %2102 = vmatpush1.msra.mxu0 1.0
        %2103 = vmatprep.subr.mxu0 0.0
        %2104 = vmatpush1.msra.mxu0 1.0
        %2105 = vmatprep.subr.mxu0 0.0
        %2106 = vmatpush1.msra.mxu0 0.0
        %2107 = vmatprep.subr.mxu0 0.0
        %2108 = vmatpush1.msra.mxu0 0.0
        %2109 = vmatprep.subr.mxu0 0.0
        %2110 = vmatpush1.msra.mxu0 0.0
        %2111 = vmatprep.subr.mxu0 0.0
        %2112 = vmatpush1.msra.mxu0 0.0
        %2113 = vmatprep.subr.mxu0 0.0
        %2114 = vmatpush1.msra.mxu0 0.0
        %2115 = vmatprep.subr.mxu0 0.0
        %2116 = vmatpush1.msra.mxu0 0.0
        %2117 = vmatprep.subr.mxu0 0.0
        %2118 = vmatpush1.msra.mxu0 0.0
        %2119 = vmatprep.subr.mxu0 0.0
        %2120 = vmatpush1.msra.mxu0 0.0
        %2121 = vmatprep.subr.mxu0 0.0
        %2122 = vmatpush1.msra.mxu0 0.0
        %2123 = vmatprep.subr.mxu0 0.0
        %2124 = vmatpush1.msra.mxu0 0.0
        %2125 = vmatprep.subr.mxu0 0.0
        %2126 = vmatpush1.msra.mxu0 0.0
        %2127 = vmatprep.subr.mxu0 0.0
        %2128 = vmatpush1.msra.mxu0 0.0
        %2129 = vmatprep.subr.mxu0 0.0
        %2130 = vmatpush1.msra.mxu0 0.0
        %2131 = vmatprep.subr.mxu0 0.0
        %2132 = vmatpush1.msra.mxu0 0.0
        %2133 = vmatprep.subr.mxu0 0.0
        %2134 = vmatpush1.msra.mxu0 0.0
        %2135 = vmatprep.subr.mxu0 0.0
        %2136 = vmatpush1.msra.mxu0 0.0
        %2137 = vmatprep.mubr.f32.mxu0 0.0
        %v2138 = vand.u32 %v1710, 4294901760
        %2139 = vmatmul.mubr.f32.gmra.mrb[0].mxu0 %v2138
        %v2140 = vpop.f32.mrb[0].mxu0
        %v2141 = vadd.f32 %v2070, %v2140
        %v2142 = vpop.f32.mrb[0].mxu0
        %2143 = vdwg.mxu0
        %v2144 = vrcp.pop %v2141
        %v2145 = vmul.f32 1.0, %v2144
        %2147 = vset.pattern.permute.xlu0 0
        %2148 = vperm.xlu0 %2147, %v2145
        %v2149 = vpop.permute.xlu0 %2148
        %v2151 = vmul.f32 %v1710, %v2149
        %2152 = vst [vmem:[%s221] sm:$0xff] %v270
        %2153 = vst [vmem:[%s228] sm:$0xff] %v285
        %2154 = vst [vmem:[%s235] sm:$0xff] %v1686
        %2155 = vst [vmem:[%s242] sm:$0xff] %v2151
        %s2156 = sand.u32 %s64, 1
        %s2157 = scalar_lea.sflag [#allocation6], %s2156
        %s2158 = sand.u32 %s64, 1
        %s2159 = smul.addr %s2158, 8
        %s2160 = scalar_lea.vmem [#allocation7], %s2159
        %s2161 = sand.u32 %s30, 1
        %s2162 = scalar_lea.sflag [#allocation9], %s2161
        %s2163 = sand.u32 %s90, 1
        %s2164 = smul.addr %s2163, 8
        %s2165 = scalar_lea.vmem [#allocation8], %s2164
        %s2166 = sand.u32 %s30, 1
        %s2167 = scalar_lea.sflag [#allocation9], %s2166
        %s2168 = sand.u32 %s116, 1
        %s2169 = smul.addr %s2168, 8
        %s2170 = scalar_lea.vmem [#allocation10], %s2169
        %s2171 = sand.u32 %s142, 1
        %s2172 = scalar_lea.sflag [#allocation12], %s2171
        %s2173 = sand.u32 %s142, 1
        %s2174 = smul.addr %s2173, 8
        %s2175 = scalar_lea.vmem [#allocation11], %s2174
        // Predicated region
        $region29: #{tpu_custom_call.1} parent=23 // pred_check
          %p2176 = pneg %p74
        $region30: #{tpu_custom_call.1} parent=23 // pred_check_branch
          %2178 = sbr.rel (%p2176) target = $region32
        $region31: #{tpu_custom_call.1} parent=23 // pred_region
          %s2180 = ssub.s32 128, 128
          %2181 = vsyncadd %s2157, %s2180
          %s2182 = smul.addr %s30, 128
          %s2183 = scalar_lea.hbm %s2, %s2182
          %s2185 = sshll.u32 %s2160, 4
          %s2186 = int_to_ptr.vmem [resolvable:$true] %s2185
          %2188 = dma.vmem_to_hbm [thread:$0]  %s2186, 128, %s2183, %s2157
        $region32: #{tpu_custom_call.1} parent=23 // pred_fallthru
          _
        // Predicated region
        $region33: #{tpu_custom_call.1} parent=23 // pred_check
          %p2189 = pneg %p100
        $region34: #{tpu_custom_call.1} parent=23 // pred_check_branch
          %2191 = sbr.rel (%p2189) target = $region36
        $region35: #{tpu_custom_call.1} parent=23 // pred_region
          %s2193 = ssub.s32 128, 128
          %2194 = vsyncadd %s2162, %s2193
          %s2195 = smul.addr %s30, 128
          %s2196 = scalar_lea.hbm %s3, %s2195
          %s2198 = sshll.u32 %s2165, 4
          %s2199 = int_to_ptr.vmem [resolvable:$true] %s2198
          %2201 = dma.vmem_to_hbm [thread:$0]  %s2199, 128, %s2196, %s2162
        $region36: #{tpu_custom_call.1} parent=23 // pred_fallthru
          _
        // Predicated region
        $region37: #{tpu_custom_call.1} parent=23 // pred_check
          %p2202 = pneg %p126
        $region38: #{tpu_custom_call.1} parent=23 // pred_check_branch
          %2204 = sbr.rel (%p2202) target = $region40
        $region39: #{tpu_custom_call.1} parent=23 // pred_region
          %s2206 = ssub.s32 128, 128
          %2207 = vsyncadd %s2167, %s2206
          %s2208 = smul.addr %s30, 128
          %s2209 = scalar_lea.hbm %s4, %s2208
          %s2211 = sshll.u32 %s2170, 4
          %s2212 = int_to_ptr.vmem [resolvable:$true] %s2211
          %2214 = dma.vmem_to_hbm [thread:$0]  %s2212, 128, %s2209, %s2167
        $region40: #{tpu_custom_call.1} parent=23 // pred_fallthru
          _
        // Predicated region
        $region41: #{tpu_custom_call.1} parent=23 // pred_check
          %p2215 = pneg %p152
        $region42: #{tpu_custom_call.1} parent=23 // pred_check_branch
          %2217 = sbr.rel (%p2215) target = $region44
        $region43: #{tpu_custom_call.1} parent=23 // pred_region
          %s2219 = ssub.s32 128, 128
          %2220 = vsyncadd %s2172, %s2219
          %s2221 = smul.addr %s30, 128
          %s2222 = scalar_lea.hbm %s5, %s2221
          %s2224 = sshll.u32 %s2175, 4
          %s2225 = int_to_ptr.vmem [resolvable:$true] %s2224
          %2227 = dma.vmem_to_hbm [thread:$0]  %s2225, 128, %s2222, %s2172
        $region44: #{tpu_custom_call.1} parent=23 // pred_fallthru
          _
      $region24: #{tpu_custom_call.1} parent=5 // pred_fallthru
        _
      %p2228 = scmp.le.s32.totalorder 2, %s25
      // Predicated region
      $region45: #{tpu_custom_call.1} parent=5 // pred_check
        %p2229 = pneg %p2228
      $region46: #{tpu_custom_call.1} parent=5 // pred_check_branch
        %2231 = sbr.rel (%p2229) target = $region48
      $region47: #{tpu_custom_call.1} parent=5 // pred_region
        %s2232 = ssub.s32 %s25, 2
        // Predicated region
        $region49: #{tpu_custom_call.1} parent=47 // pred_check
          %p2233 = pneg %p80
        $region50: #{tpu_custom_call.1} parent=47 // pred_check_branch
          %2235 = sbr.rel (%p2233) target = $region52
        $region51: #{tpu_custom_call.1} parent=47 // pred_region
          %s2236 = sand.u32 %s65, 1
          %s2237 = scalar_lea.sflag [#allocation6], %s2236
          %s2238 = sand.u32 %s65, 1
          %s2239 = smul.addr %s2238, 8
          %s2240 = scalar_lea.vmem [#allocation7], %s2239
          %2241 = dma.done %s2237, 128
        $region52: #{tpu_custom_call.1} parent=47 // pred_fallthru
          _
        // Predicated region
        $region53: #{tpu_custom_call.1} parent=47 // pred_check
          %p2242 = pneg %p106
        $region54: #{tpu_custom_call.1} parent=47 // pred_check_branch
          %2244 = sbr.rel (%p2242) target = $region56
        $region55: #{tpu_custom_call.1} parent=47 // pred_region
          %s2245 = sand.u32 %s31, 1
          %s2246 = scalar_lea.sflag [#allocation9], %s2245
          %s2247 = sand.u32 %s91, 1
          %s2248 = smul.addr %s2247, 8
          %s2249 = scalar_lea.vmem [#allocation8], %s2248
          %2250 = dma.done %s2246, 128
        $region56: #{tpu_custom_call.1} parent=47 // pred_fallthru
          _
        // Predicated region
        $region57: #{tpu_custom_call.1} parent=47 // pred_check
          %p2251 = pneg %p132
        $region58: #{tpu_custom_call.1} parent=47 // pred_check_branch
          %2253 = sbr.rel (%p2251) target = $region60
        $region59: #{tpu_custom_call.1} parent=47 // pred_region
          %s2254 = sand.u32 %s31, 1
          %s2255 = scalar_lea.sflag [#allocation9], %s2254
          %s2256 = sand.u32 %s117, 1
          %s2257 = smul.addr %s2256, 8
          %s2258 = scalar_lea.vmem [#allocation10], %s2257
          %2259 = dma.done %s2255, 128
        $region60: #{tpu_custom_call.1} parent=47 // pred_fallthru
          _
        // Predicated region
        $region61: #{tpu_custom_call.1} parent=47 // pred_check
          %p2260 = pneg %p158
        $region62: #{tpu_custom_call.1} parent=47 // pred_check_branch
          %2262 = sbr.rel (%p2260) target = $region64
        $region63: #{tpu_custom_call.1} parent=47 // pred_region
          %s2263 = sand.u32 %s143, 1
          %s2264 = scalar_lea.sflag [#allocation12], %s2263
          %s2265 = sand.u32 %s143, 1
          %s2266 = smul.addr %s2265, 8
          %s2267 = scalar_lea.vmem [#allocation11], %s2266
          %2268 = dma.done %s2264, 128
        $region64: #{tpu_custom_call.1} parent=47 // pred_fallthru
          _
      $region48: #{tpu_custom_call.1} parent=5 // pred_fallthru
        _
    $region6: #{tpu_custom_call.1} parent=1 // loop_footer
      %s29 = sadd.s32 1, %s25
    $region7: #{tpu_custom_call.1} parent=1 // loop_footer_branch
      %24 = sbr.rel target = $region3
    $region8: #{tpu_custom_call.1} parent=1 // loop_exit
      _
    %2269 = vsyncpa [#allocation5], 1
    %s2270 = scalar_lea.sflag [#allocation5], 1
    %2271 = vsyncpa %s2270, 1
    %2272 = vsyncpa [#allocation6], 1
    %s2273 = scalar_lea.sflag [#allocation6], 1
    %2274 = vsyncpa %s2273, 1
    %2275 = vsyncpa [#allocation9], 1
    %s2276 = scalar_lea.sflag [#allocation9], 1
    %2277 = vsyncpa %s2276, 1
    %2278 = vsyncpa [#allocation12], 1
    %s2279 = scalar_lea.sflag [#allocation12], 1
    %2280 = vsyncpa %s2279, 1

</llo_original>
